<compile_context>
chip_gen: v6e
topology: v6e:2x2x1
jax: 0.10.0
libtpu: 0.0.40
codegen_flags: <defaults>
</compile_context>

<pallas_src>
import jax
import jax.numpy as jnp
from jax.experimental import pallas as pl
from jax.experimental.pallas import tpu as pltpu

LEVELS = [8, 8, 8, 5, 5, 5]
UP, LOW = 1.0, -1.0
EPS_A = 1e-3
D = len(LEVELS)
N_THRE = max(l - 1 for l in LEVELS)              # 7 (padded table width)
N_THRE_PER_CH = tuple(l - 1 for l in LEVELS)     # (7,7,7,4,4,4)


# ----------------------------- Pallas kernel ------------------------------- #
def fdq_kernel(x_ref, scale1_ref, thre_ref, code_tab_ref, idx_tab_ref,
               codes_ref, idx_ref):
    # x_ref / codes_ref: (D, rows, 128) f32 blocks; idx_ref: (rows, 128) int32.
    # scale1/thre/code_tab/idx_tab are tiny per-channel tables in SMEM.
    x = [x_ref[c] for c in range(D)]             # D dense (rows,128) slabs

    # F.normalize(z, p=2, dim=-1): x / max(||x||, 1e-12) == x * rsqrt(max(ss,1e-24))
    ss = x[0] * x[0]
    for c in range(1, D):
        ss = ss + x[c] * x[c]                    # pure VPU adds (no XLU reduce)
    inv_norm = jax.lax.rsqrt(jnp.maximum(ss, 1e-24))   # EUP slot

    idx_acc = None
    for c in range(D):                           # static channel unroll
        x_s = (x[c] * inv_norm) * scale1_ref[c]  # scalar operand from SMEM
        code = jnp.broadcast_to(code_tab_ref[c, 0], x_s.shape)      # k=0: low
        widx = jnp.broadcast_to(idx_tab_ref[c, 0], x_s.shape)       # int32
        for i in range(N_THRE_PER_CH[c]):        # static threshold unroll
            mask = x_s > thre_ref[c, i]          # shared compare
            code = jnp.where(mask, code_tab_ref[c, i + 1], code)
            widx = jnp.where(mask, idx_tab_ref[c, i + 1], widx)
        codes_ref[c] = code                      # dense unmasked store
        idx_acc = widx if idx_acc is None else idx_acc + widx
    idx_ref[...] = idx_acc                       # dense unmasked int32 store


# --------------------------- parameter plumbing ----------------------------- #
def make_ltq_params(key, num_splits, channels=3):
    """Synthetic deterministic init of one LTQSoft; returns per-channel
    (scale1, scale2, bias, forward-thresholds, step_right values)."""
    n_val = num_splits - 1
    interval = (UP - LOW) / n_val
    k1, k2, k3, k4, k5 = jax.random.split(key, 5)
    start = LOW + 0.05 * jax.random.normal(k1, (channels,), jnp.float32)
    a = interval * (1.0 + 0.1 * jax.random.normal(k2, (channels, n_val), jnp.float32))
    scale1 = 1.0 + 0.05 * jax.random.normal(k3, (channels,), jnp.float32)
    scale2 = 1.0 + 0.05 * jax.random.normal(k4, (channels,), jnp.float32)
    bias = 0.05 * jax.random.normal(k5, (channels,), jnp.float32)

    # a_pos = softmax(where(a > eps, a, eps), dim=1) * (up - low)
    a_pos = jnp.where(a > EPS_A, a, EPS_A)
    a_pos = jax.nn.softmax(a_pos, axis=1) * (UP - LOW)

    # Threshold recurrence identical to LTQSoft.forward / locate_intervals.
    thres = []
    thr = start + a_pos[:, 0] / 2
    thres.append(thr)
    for i in range(1, n_val):
        thr = thr + a_pos[:, i - 1] / 2 + a_pos[:, i] / 2
        thres.append(thr)
    thre = jnp.stack(thres, axis=1)                               # (channels, n_val)

    # step_right after i-th update: low + (i+1) * interval
    steps = LOW + interval * jnp.arange(1, n_val + 1, dtype=jnp.float32)
    step = jnp.broadcast_to(steps, (channels, n_val))
    return scale1, scale2, bias, thre, step


def build_params(key):
    """Raw per-channel parameters (for the reference and table construction)."""
    k8, k5 = jax.random.split(key)
    s1_8, s2_8, b_8, thre_8, step_8 = make_ltq_params(k8, num_splits=8)
    s1_5, s2_5, b_5, thre_5, step_5 = make_ltq_params(k5, num_splits=5)

    pad = N_THRE - thre_5.shape[1]
    thre_5 = jnp.concatenate([thre_5, jnp.full((3, pad), jnp.inf, jnp.float32)], axis=1)
    step_5 = jnp.concatenate([step_5, jnp.zeros((3, pad), jnp.float32)], axis=1)

    return dict(
        scale1=jnp.concatenate([s1_8, s1_5]).astype(jnp.float32),          # (6,)
        scale2=jnp.concatenate([s2_8, s2_5]).astype(jnp.float32),          # (6,)
        bias=jnp.concatenate([b_8, b_5]).astype(jnp.float32),              # (6,)
        thre=jnp.concatenate([thre_8, thre_5], axis=0).astype(jnp.float32),# (6,7) inf-padded
        step=jnp.concatenate([step_8, step_5], axis=0).astype(jnp.float32),# (6,7)
        basis=jnp.cumprod(jnp.array([1] + LEVELS[:-1], dtype=jnp.int32)),  # (6,)
    )


def make_kernel_tables(p):
    """Precompute per-channel lookup tables so the kernel fuses the forward
    interval selection with codes_to_indices (exact: both are deterministic
    functions of the selected interval)."""
    step_full = jnp.concatenate(
        [jnp.full((D, 1), LOW, jnp.float32), p['step']], axis=1)           # (6,8) k=0 -> low
    code_tab = step_full * p['scale2'][:, None] + p['bias'][:, None]       # (6,8)
    code_s = code_tab * p['scale1'][:, None]
    cnt = jnp.sum((code_s[:, :, None] > p['thre'][:, None, :]).astype(jnp.int32),
                  axis=-1)                                                  # (6,8)
    idx_tab = (cnt * p['basis'][:, None]).astype(jnp.int32)                # (6,8)
    return (p['scale1'], p['thre'], code_tab.astype(jnp.float32), idx_tab)


# ------------------------------- wrapper ------------------------------------ #
def _choose_tiling(hw, batch, target_rows=512):
    """Pad tokens to a multiple of 128 lanes and pick rows-per-tile that is a
    multiple of 8 (or the full extent), targeting ~64K tokens per grid step."""
    hw_pad = ((hw + 127) // 128) * 128
    r_total = hw_pad // 128

    def largest_div(rt, cap):
        r = min(cap, rt)
        r -= r % 8
        while r >= 8:
            if rt % r == 0:
                return r
            r -= 8
        return None

    rows = largest_div(r_total, target_rows)
    if rows is None:
        if r_total <= target_rows:
            rows = r_total                            # full-extent block is legal
        else:
            r_total = ((r_total + 7) // 8) * 8        # pad rows so an x8 divisor exists
            hw_pad = r_total * 128
            rows = largest_div(r_total, target_rows)
    # v7x has 2 TensorCores: expose >= 2 parallel grid programs when possible.
    if batch * (r_total // rows) < 2:
        smaller = largest_div(r_total, max(r_total // 2, 8))
        if smaller is not None and smaller < rows:
            rows = smaller
    return hw_pad, r_total, rows


def fdq_norm_forward(z, kernel_params, target_rows=512):
    """z: (B, 6, H, W) f32 NCHW (as FDQNorm.forward). Returns (out, indices)."""
    B, d, H, W = z.shape
    assert d == D
    HW = H * W
    hw_pad, r_total, rows = _choose_tiling(HW, B, target_rows)
    x = z.reshape(B, D, HW).astype(jnp.float32)               # free contiguous reshape
    if hw_pad != HW:
        x = jnp.pad(x, ((0, 0), (0, 0), (0, hw_pad - HW)))    # robustness fallback
    x = x.reshape(B, D, r_total, 128)
    scale1, thre, code_tab, idx_tab = kernel_params

    smem = pl.BlockSpec(memory_space=pltpu.MemorySpace.SMEM)
    codes, idx = pl.pallas_call(
        fdq_kernel,
        out_shape=(jax.ShapeDtypeStruct((B, D, r_total, 128), jnp.float32),
                   jax.ShapeDtypeStruct((B, r_total, 128), jnp.int32)),
        grid_spec=pltpu.PrefetchScalarGridSpec(
            num_scalar_prefetch=0,
            grid=(B, r_total // rows),
            in_specs=[
                pl.BlockSpec((pl.Squeezed(), D, rows, 128),
                             lambda b, i: (b, 0, i, 0)),       # z slabs
                smem,                                           # scale1   (6,)
                smem,                                           # thre     (6,7)
                smem,                                           # code_tab (6,8)
                smem,                                           # idx_tab  (6,8) int32
            ],
            out_specs=[
                pl.BlockSpec((pl.Squeezed(), D, rows, 128),
                             lambda b, i: (b, 0, i, 0)),       # codes
                pl.BlockSpec((pl.Squeezed(), rows, 128),
                             lambda b, i: (b, i, 0)),          # indices
            ],
        ),
        compiler_params=pltpu.CompilerParams(
            dimension_semantics=("parallel", "parallel")),
    )(x, scale1, thre, code_tab, idx_tab)

    codes = codes.reshape(B, D, hw_pad)[:, :, :HW].reshape(B, D, H, W)   # free when unpadded
    indices = idx.reshape(B, hw_pad)[:, :HW].reshape(B, H, W)
    return codes, indices


# --------------------------- pure-JAX reference ----------------------------- #
def fdq_norm_reference(z, p):
    """Literal two-pass semantics (forward selection, then locate_intervals),
    independent of the fused lookup tables the kernel uses."""
    B, d, H, W = z.shape
    x = z.reshape(B, D, H * W).astype(jnp.float32)
    norm = jnp.sqrt(jnp.sum(x * x, axis=1, keepdims=True))
    xn = x / jnp.maximum(norm, 1e-12)
    x_s = xn * p['scale1'][None, :, None]
    x_fwd = jnp.full_like(x_s, LOW)
    for i in range(N_THRE):
        x_fwd = jnp.where(x_s > p['thre'][None, :, i, None],
                          p['step'][None, :, i, None], x_fwd)
    code = x_fwd * p['scale2'][None, :, None] + p['bias'][None, :, None]
    code_s = code * p['scale1'][None, :, None]
    cnt = jnp.zeros_like(code_s, dtype=jnp.int32)
    for i in range(N_THRE):
        cnt = cnt + (code_s > p['thre'][None, :, i, None]).astype(jnp.int32)
    idx = jnp.sum(cnt * p['basis'][None, :, None], axis=1).astype(jnp.int32)
    return code.reshape(B, D, H, W), idx.reshape(B, H, W)


if __name__ == "__main__":
    key = jax.random.PRNGKey(0)
    k_param, k_input = jax.random.split(key)
    raw_params = build_params(k_param)
    kernel_tables = make_kernel_tables(raw_params)

    B, H, W = 2, 16, 16
    z = jax.random.normal(k_input, (B, D, H, W), dtype=jnp.float32)   # NCHW

    out, indices = fdq_norm_forward(z, kernel_tables)
    out, indices = jax.block_until_ready((out, indices))

    out_ref, idx_ref = fdq_norm_reference(z, raw_params)
    # Quantization decisions can flip only for values numerically on a threshold
    # (rsqrt vs sqrt+divide rounding); require (near-)exact agreement on >99%.
    code_match = float(jnp.mean((jnp.abs(out - out_ref) < 1e-5).astype(jnp.float32)))
    idx_match = float(jnp.mean((indices == idx_ref).astype(jnp.float32)))
    assert out.shape == (B, D, H, W) and indices.shape == (B, H, W)
    assert indices.dtype == jnp.int32
    assert code_match > 0.99, f"code match frac {code_match}"
    assert idx_match > 0.99, f"index match frac {idx_match}"

    print("KERNEL_OK")
</pallas_src>

<mosaic_0001>
module attributes {stable_mosaic.version = 11 : i64} {
  func.func @fdq_kernel(%arg0: i32, %arg1: i32, %arg2: memref<1x6x2x128xf32, #tpu.memory_space<vmem>>, %arg3: memref<6xf32, #tpu.memory_space<smem>>, %arg4: memref<6x7xf32, #tpu.memory_space<smem>>, %arg5: memref<6x8xf32, #tpu.memory_space<smem>>, %arg6: memref<6x8xi32, #tpu.memory_space<smem>>, %arg7: memref<1x6x2x128xf32, #tpu.memory_space<vmem>>, %arg8: memref<1x2x128xi32, #tpu.memory_space<vmem>>) attributes {dimension_semantics = [#tpu.dimension_semantics<parallel>, #tpu.dimension_semantics<parallel>], iteration_bounds = array<i64: 2, 1>, scalar_prefetch = 0 : i64, scratch_operands = 0 : i64, tpu.core_type = #tpu.core_type<tc>, window_params = [{transform_indices = @transform_0, window_bounds = array<i64: 1, 6, 2, 128>}, {transform_indices = @transform_1, window_bounds = array<i64: 6>}, {transform_indices = @transform_2, window_bounds = array<i64: 6, 7>}, {transform_indices = @transform_3, window_bounds = array<i64: 6, 8>}, {transform_indices = @transform_4, window_bounds = array<i64: 6, 8>}, {transform_indices = @transform_5, window_bounds = array<i64: 1, 6, 2, 128>}, {transform_indices = @transform_6, window_bounds = array<i64: 1, 2, 128>}]} {
    %c0 = arith.constant 0 : index
    %c0_0 = arith.constant 0 : index
    %c0_1 = arith.constant 0 : index
    %c0_2 = arith.constant 0 : index
    %0 = vector.load %arg2[%c0, %c0_0, %c0_1, %c0_2] : memref<1x6x2x128xf32, #tpu.memory_space<vmem>>, vector<1x1x2x128xf32>
    %1 = vector.shape_cast %0 : vector<1x1x2x128xf32> to vector<2x128xf32>
    %c0_3 = arith.constant 0 : index
    %c1 = arith.constant 1 : index
    %c0_4 = arith.constant 0 : index
    %c0_5 = arith.constant 0 : index
    %2 = vector.load %arg2[%c0_3, %c1, %c0_4, %c0_5] : memref<1x6x2x128xf32, #tpu.memory_space<vmem>>, vector<1x1x2x128xf32>
    %3 = vector.shape_cast %2 : vector<1x1x2x128xf32> to vector<2x128xf32>
    %c0_6 = arith.constant 0 : index
    %c2 = arith.constant 2 : index
    %c0_7 = arith.constant 0 : index
    %c0_8 = arith.constant 0 : index
    %4 = vector.load %arg2[%c0_6, %c2, %c0_7, %c0_8] : memref<1x6x2x128xf32, #tpu.memory_space<vmem>>, vector<1x1x2x128xf32>
    %5 = vector.shape_cast %4 : vector<1x1x2x128xf32> to vector<2x128xf32>
    %c0_9 = arith.constant 0 : index
    %c3 = arith.constant 3 : index
    %c0_10 = arith.constant 0 : index
    %c0_11 = arith.constant 0 : index
    %6 = vector.load %arg2[%c0_9, %c3, %c0_10, %c0_11] : memref<1x6x2x128xf32, #tpu.memory_space<vmem>>, vector<1x1x2x128xf32>
    %7 = vector.shape_cast %6 : vector<1x1x2x128xf32> to vector<2x128xf32>
    %c0_12 = arith.constant 0 : index
    %c4 = arith.constant 4 : index
    %c0_13 = arith.constant 0 : index
    %c0_14 = arith.constant 0 : index
    %8 = vector.load %arg2[%c0_12, %c4, %c0_13, %c0_14] : memref<1x6x2x128xf32, #tpu.memory_space<vmem>>, vector<1x1x2x128xf32>
    %9 = vector.shape_cast %8 : vector<1x1x2x128xf32> to vector<2x128xf32>
    %c0_15 = arith.constant 0 : index
    %c5 = arith.constant 5 : index
    %c0_16 = arith.constant 0 : index
    %c0_17 = arith.constant 0 : index
    %10 = vector.load %arg2[%c0_15, %c5, %c0_16, %c0_17] : memref<1x6x2x128xf32, #tpu.memory_space<vmem>>, vector<1x1x2x128xf32>
    %11 = vector.shape_cast %10 : vector<1x1x2x128xf32> to vector<2x128xf32>
    %12 = arith.mulf %1, %1 : vector<2x128xf32>
    %13 = arith.mulf %3, %3 : vector<2x128xf32>
    %14 = arith.addf %12, %13 : vector<2x128xf32>
    %15 = arith.mulf %5, %5 : vector<2x128xf32>
    %16 = arith.addf %14, %15 : vector<2x128xf32>
    %17 = arith.mulf %7, %7 : vector<2x128xf32>
    %18 = arith.addf %16, %17 : vector<2x128xf32>
    %19 = arith.mulf %9, %9 : vector<2x128xf32>
    %20 = arith.addf %18, %19 : vector<2x128xf32>
    %21 = arith.mulf %11, %11 : vector<2x128xf32>
    %22 = arith.addf %20, %21 : vector<2x128xf32>
    %cst = arith.constant 1.000000e-24 : f32
    %23 = vector.broadcast %cst : f32 to vector<2x128xf32>
    %24 = arith.maximumf %22, %23 : vector<2x128xf32>
    %25 = math.rsqrt %24 : vector<2x128xf32>
    %26 = arith.mulf %1, %25 : vector<2x128xf32>
    %c0_18 = arith.constant 0 : index
    %27 = memref.load %arg3[%c0_18] : memref<6xf32, #tpu.memory_space<smem>>
    %28 = vector.broadcast %27 : f32 to vector<2x128xf32>
    %29 = arith.mulf %26, %28 : vector<2x128xf32>
    %c0_19 = arith.constant 0 : index
    %c0_20 = arith.constant 0 : index
    %30 = memref.load %arg5[%c0_19, %c0_20] : memref<6x8xf32, #tpu.memory_space<smem>>
    %31 = vector.broadcast %30 : f32 to vector<2x128xf32>
    %c0_21 = arith.constant 0 : index
    %c0_22 = arith.constant 0 : index
    %32 = memref.load %arg6[%c0_21, %c0_22] : memref<6x8xi32, #tpu.memory_space<smem>>
    %33 = vector.broadcast %32 : i32 to vector<2x128xi32>
    %c0_23 = arith.constant 0 : index
    %c0_24 = arith.constant 0 : index
    %34 = memref.load %arg4[%c0_23, %c0_24] : memref<6x7xf32, #tpu.memory_space<smem>>
    %35 = vector.broadcast %34 : f32 to vector<2x128xf32>
    %36 = arith.cmpf ogt, %29, %35 : vector<2x128xf32>
    %c0_25 = arith.constant 0 : index
    %c1_26 = arith.constant 1 : index
    %37 = memref.load %arg5[%c0_25, %c1_26] : memref<6x8xf32, #tpu.memory_space<smem>>
    %38 = vector.broadcast %37 : f32 to vector<2x128xf32>
    %39 = arith.select %36, %38, %31 : vector<2x128xi1>, vector<2x128xf32>
    %c0_27 = arith.constant 0 : index
    %c1_28 = arith.constant 1 : index
    %40 = memref.load %arg6[%c0_27, %c1_28] : memref<6x8xi32, #tpu.memory_space<smem>>
    %41 = vector.broadcast %40 : i32 to vector<2x128xi32>
    %42 = arith.select %36, %41, %33 : vector<2x128xi1>, vector<2x128xi32>
    %c0_29 = arith.constant 0 : index
    %c1_30 = arith.constant 1 : index
    %43 = memref.load %arg4[%c0_29, %c1_30] : memref<6x7xf32, #tpu.memory_space<smem>>
    %44 = vector.broadcast %43 : f32 to vector<2x128xf32>
    %45 = arith.cmpf ogt, %29, %44 : vector<2x128xf32>
    %c0_31 = arith.constant 0 : index
    %c2_32 = arith.constant 2 : index
    %46 = memref.load %arg5[%c0_31, %c2_32] : memref<6x8xf32, #tpu.memory_space<smem>>
    %47 = vector.broadcast %46 : f32 to vector<2x128xf32>
    %48 = arith.select %45, %47, %39 : vector<2x128xi1>, vector<2x128xf32>
    %c0_33 = arith.constant 0 : index
    %c2_34 = arith.constant 2 : index
    %49 = memref.load %arg6[%c0_33, %c2_34] : memref<6x8xi32, #tpu.memory_space<smem>>
    %50 = vector.broadcast %49 : i32 to vector<2x128xi32>
    %51 = arith.select %45, %50, %42 : vector<2x128xi1>, vector<2x128xi32>
    %c0_35 = arith.constant 0 : index
    %c2_36 = arith.constant 2 : index
    %52 = memref.load %arg4[%c0_35, %c2_36] : memref<6x7xf32, #tpu.memory_space<smem>>
    %53 = vector.broadcast %52 : f32 to vector<2x128xf32>
    %54 = arith.cmpf ogt, %29, %53 : vector<2x128xf32>
    %c0_37 = arith.constant 0 : index
    %c3_38 = arith.constant 3 : index
    %55 = memref.load %arg5[%c0_37, %c3_38] : memref<6x8xf32, #tpu.memory_space<smem>>
    %56 = vector.broadcast %55 : f32 to vector<2x128xf32>
    %57 = arith.select %54, %56, %48 : vector<2x128xi1>, vector<2x128xf32>
    %c0_39 = arith.constant 0 : index
    %c3_40 = arith.constant 3 : index
    %58 = memref.load %arg6[%c0_39, %c3_40] : memref<6x8xi32, #tpu.memory_space<smem>>
    %59 = vector.broadcast %58 : i32 to vector<2x128xi32>
    %60 = arith.select %54, %59, %51 : vector<2x128xi1>, vector<2x128xi32>
    %c0_41 = arith.constant 0 : index
    %c3_42 = arith.constant 3 : index
    %61 = memref.load %arg4[%c0_41, %c3_42] : memref<6x7xf32, #tpu.memory_space<smem>>
    %62 = vector.broadcast %61 : f32 to vector<2x128xf32>
    %63 = arith.cmpf ogt, %29, %62 : vector<2x128xf32>
    %c0_43 = arith.constant 0 : index
    %c4_44 = arith.constant 4 : index
    %64 = memref.load %arg5[%c0_43, %c4_44] : memref<6x8xf32, #tpu.memory_space<smem>>
    %65 = vector.broadcast %64 : f32 to vector<2x128xf32>
    %66 = arith.select %63, %65, %57 : vector<2x128xi1>, vector<2x128xf32>
    %c0_45 = arith.constant 0 : index
    %c4_46 = arith.constant 4 : index
    %67 = memref.load %arg6[%c0_45, %c4_46] : memref<6x8xi32, #tpu.memory_space<smem>>
    %68 = vector.broadcast %67 : i32 to vector<2x128xi32>
    %69 = arith.select %63, %68, %60 : vector<2x128xi1>, vector<2x128xi32>
    %c0_47 = arith.constant 0 : index
    %c4_48 = arith.constant 4 : index
    %70 = memref.load %arg4[%c0_47, %c4_48] : memref<6x7xf32, #tpu.memory_space<smem>>
    %71 = vector.broadcast %70 : f32 to vector<2x128xf32>
    %72 = arith.cmpf ogt, %29, %71 : vector<2x128xf32>
    %c0_49 = arith.constant 0 : index
    %c5_50 = arith.constant 5 : index
    %73 = memref.load %arg5[%c0_49, %c5_50] : memref<6x8xf32, #tpu.memory_space<smem>>
    %74 = vector.broadcast %73 : f32 to vector<2x128xf32>
    %75 = arith.select %72, %74, %66 : vector<2x128xi1>, vector<2x128xf32>
    %c0_51 = arith.constant 0 : index
    %c5_52 = arith.constant 5 : index
    %76 = memref.load %arg6[%c0_51, %c5_52] : memref<6x8xi32, #tpu.memory_space<smem>>
    %77 = vector.broadcast %76 : i32 to vector<2x128xi32>
    %78 = arith.select %72, %77, %69 : vector<2x128xi1>, vector<2x128xi32>
    %c0_53 = arith.constant 0 : index
    %c5_54 = arith.constant 5 : index
    %79 = memref.load %arg4[%c0_53, %c5_54] : memref<6x7xf32, #tpu.memory_space<smem>>
    %80 = vector.broadcast %79 : f32 to vector<2x128xf32>
    %81 = arith.cmpf ogt, %29, %80 : vector<2x128xf32>
    %c0_55 = arith.constant 0 : index
    %c6 = arith.constant 6 : index
    %82 = memref.load %arg5[%c0_55, %c6] : memref<6x8xf32, #tpu.memory_space<smem>>
    %83 = vector.broadcast %82 : f32 to vector<2x128xf32>
    %84 = arith.select %81, %83, %75 : vector<2x128xi1>, vector<2x128xf32>
    %c0_56 = arith.constant 0 : index
    %c6_57 = arith.constant 6 : index
    %85 = memref.load %arg6[%c0_56, %c6_57] : memref<6x8xi32, #tpu.memory_space<smem>>
    %86 = vector.broadcast %85 : i32 to vector<2x128xi32>
    %87 = arith.select %81, %86, %78 : vector<2x128xi1>, vector<2x128xi32>
    %c0_58 = arith.constant 0 : index
    %c6_59 = arith.constant 6 : index
    %88 = memref.load %arg4[%c0_58, %c6_59] : memref<6x7xf32, #tpu.memory_space<smem>>
    %89 = vector.broadcast %88 : f32 to vector<2x128xf32>
    %90 = arith.cmpf ogt, %29, %89 : vector<2x128xf32>
    %c0_60 = arith.constant 0 : index
    %c7 = arith.constant 7 : index
    %91 = memref.load %arg5[%c0_60, %c7] : memref<6x8xf32, #tpu.memory_space<smem>>
    %92 = vector.broadcast %91 : f32 to vector<2x128xf32>
    %93 = arith.select %90, %92, %84 : vector<2x128xi1>, vector<2x128xf32>
    %c0_61 = arith.constant 0 : index
    %c7_62 = arith.constant 7 : index
    %94 = memref.load %arg6[%c0_61, %c7_62] : memref<6x8xi32, #tpu.memory_space<smem>>
    %95 = vector.broadcast %94 : i32 to vector<2x128xi32>
    %96 = arith.select %90, %95, %87 : vector<2x128xi1>, vector<2x128xi32>
    %c0_63 = arith.constant 0 : index
    %c0_64 = arith.constant 0 : index
    %c0_65 = arith.constant 0 : index
    %c0_66 = arith.constant 0 : index
    %97 = vector.load %arg7[%c0_63, %c0_64, %c0_65, %c0_66] : memref<1x6x2x128xf32, #tpu.memory_space<vmem>>, vector<1x1x2x128xf32>
    %98 = vector.shape_cast %97 : vector<1x1x2x128xf32> to vector<2x128xf32>
    %99 = vector.shape_cast %93 : vector<2x128xf32> to vector<1x1x2x128xf32>
    tpu.vector_store %arg7[%c0_63, %c0_64, %c0_65, %c0_66], %99 {strides = array<i32>} : memref<1x6x2x128xf32, #tpu.memory_space<vmem>>, vector<1x1x2x128xf32>,
    %100 = arith.mulf %3, %25 : vector<2x128xf32>
    %c1_67 = arith.constant 1 : index
    %101 = memref.load %arg3[%c1_67] : memref<6xf32, #tpu.memory_space<smem>>
    %102 = vector.broadcast %101 : f32 to vector<2x128xf32>
    %103 = arith.mulf %100, %102 : vector<2x128xf32>
    %c1_68 = arith.constant 1 : index
    %c0_69 = arith.constant 0 : index
    %104 = memref.load %arg5[%c1_68, %c0_69] : memref<6x8xf32, #tpu.memory_space<smem>>
    %105 = vector.broadcast %104 : f32 to vector<2x128xf32>
    %c1_70 = arith.constant 1 : index
    %c0_71 = arith.constant 0 : index
    %106 = memref.load %arg6[%c1_70, %c0_71] : memref<6x8xi32, #tpu.memory_space<smem>>
    %107 = vector.broadcast %106 : i32 to vector<2x128xi32>
    %c1_72 = arith.constant 1 : index
    %c0_73 = arith.constant 0 : index
    %108 = memref.load %arg4[%c1_72, %c0_73] : memref<6x7xf32, #tpu.memory_space<smem>>
    %109 = vector.broadcast %108 : f32 to vector<2x128xf32>
    %110 = arith.cmpf ogt, %103, %109 : vector<2x128xf32>
    %c1_74 = arith.constant 1 : index
    %c1_75 = arith.constant 1 : index
    %111 = memref.load %arg5[%c1_74, %c1_75] : memref<6x8xf32, #tpu.memory_space<smem>>
    %112 = vector.broadcast %111 : f32 to vector<2x128xf32>
    %113 = arith.select %110, %112, %105 : vector<2x128xi1>, vector<2x128xf32>
    %c1_76 = arith.constant 1 : index
    %c1_77 = arith.constant 1 : index
    %114 = memref.load %arg6[%c1_76, %c1_77] : memref<6x8xi32, #tpu.memory_space<smem>>
    %115 = vector.broadcast %114 : i32 to vector<2x128xi32>
    %116 = arith.select %110, %115, %107 : vector<2x128xi1>, vector<2x128xi32>
    %c1_78 = arith.constant 1 : index
    %c1_79 = arith.constant 1 : index
    %117 = memref.load %arg4[%c1_78, %c1_79] : memref<6x7xf32, #tpu.memory_space<smem>>
    %118 = vector.broadcast %117 : f32 to vector<2x128xf32>
    %119 = arith.cmpf ogt, %103, %118 : vector<2x128xf32>
    %c1_80 = arith.constant 1 : index
    %c2_81 = arith.constant 2 : index
    %120 = memref.load %arg5[%c1_80, %c2_81] : memref<6x8xf32, #tpu.memory_space<smem>>
    %121 = vector.broadcast %120 : f32 to vector<2x128xf32>
    %122 = arith.select %119, %121, %113 : vector<2x128xi1>, vector<2x128xf32>
    %c1_82 = arith.constant 1 : index
    %c2_83 = arith.constant 2 : index
    %123 = memref.load %arg6[%c1_82, %c2_83] : memref<6x8xi32, #tpu.memory_space<smem>>
    %124 = vector.broadcast %123 : i32 to vector<2x128xi32>
    %125 = arith.select %119, %124, %116 : vector<2x128xi1>, vector<2x128xi32>
    %c1_84 = arith.constant 1 : index
    %c2_85 = arith.constant 2 : index
    %126 = memref.load %arg4[%c1_84, %c2_85] : memref<6x7xf32, #tpu.memory_space<smem>>
    %127 = vector.broadcast %126 : f32 to vector<2x128xf32>
    %128 = arith.cmpf ogt, %103, %127 : vector<2x128xf32>
    %c1_86 = arith.constant 1 : index
    %c3_87 = arith.constant 3 : index
    %129 = memref.load %arg5[%c1_86, %c3_87] : memref<6x8xf32, #tpu.memory_space<smem>>
    %130 = vector.broadcast %129 : f32 to vector<2x128xf32>
    %131 = arith.select %128, %130, %122 : vector<2x128xi1>, vector<2x128xf32>
    %c1_88 = arith.constant 1 : index
    %c3_89 = arith.constant 3 : index
    %132 = memref.load %arg6[%c1_88, %c3_89] : memref<6x8xi32, #tpu.memory_space<smem>>
    %133 = vector.broadcast %132 : i32 to vector<2x128xi32>
    %134 = arith.select %128, %133, %125 : vector<2x128xi1>, vector<2x128xi32>
    %c1_90 = arith.constant 1 : index
    %c3_91 = arith.constant 3 : index
    %135 = memref.load %arg4[%c1_90, %c3_91] : memref<6x7xf32, #tpu.memory_space<smem>>
    %136 = vector.broadcast %135 : f32 to vector<2x128xf32>
    %137 = arith.cmpf ogt, %103, %136 : vector<2x128xf32>
    %c1_92 = arith.constant 1 : index
    %c4_93 = arith.constant 4 : index
    %138 = memref.load %arg5[%c1_92, %c4_93] : memref<6x8xf32, #tpu.memory_space<smem>>
    %139 = vector.broadcast %138 : f32 to vector<2x128xf32>
    %140 = arith.select %137, %139, %131 : vector<2x128xi1>, vector<2x128xf32>
    %c1_94 = arith.constant 1 : index
    %c4_95 = arith.constant 4 : index
    %141 = memref.load %arg6[%c1_94, %c4_95] : memref<6x8xi32, #tpu.memory_space<smem>>
    %142 = vector.broadcast %141 : i32 to vector<2x128xi32>
    %143 = arith.select %137, %142, %134 : vector<2x128xi1>, vector<2x128xi32>
    %c1_96 = arith.constant 1 : index
    %c4_97 = arith.constant 4 : index
    %144 = memref.load %arg4[%c1_96, %c4_97] : memref<6x7xf32, #tpu.memory_space<smem>>
    %145 = vector.broadcast %144 : f32 to vector<2x128xf32>
    %146 = arith.cmpf ogt, %103, %145 : vector<2x128xf32>
    %c1_98 = arith.constant 1 : index
    %c5_99 = arith.constant 5 : index
    %147 = memref.load %arg5[%c1_98, %c5_99] : memref<6x8xf32, #tpu.memory_space<smem>>
    %148 = vector.broadcast %147 : f32 to vector<2x128xf32>
    %149 = arith.select %146, %148, %140 : vector<2x128xi1>, vector<2x128xf32>
    %c1_100 = arith.constant 1 : index
    %c5_101 = arith.constant 5 : index
    %150 = memref.load %arg6[%c1_100, %c5_101] : memref<6x8xi32, #tpu.memory_space<smem>>
    %151 = vector.broadcast %150 : i32 to vector<2x128xi32>
    %152 = arith.select %146, %151, %143 : vector<2x128xi1>, vector<2x128xi32>
    %c1_102 = arith.constant 1 : index
    %c5_103 = arith.constant 5 : index
    %153 = memref.load %arg4[%c1_102, %c5_103] : memref<6x7xf32, #tpu.memory_space<smem>>
    %154 = vector.broadcast %153 : f32 to vector<2x128xf32>
    %155 = arith.cmpf ogt, %103, %154 : vector<2x128xf32>
    %c1_104 = arith.constant 1 : index
    %c6_105 = arith.constant 6 : index
    %156 = memref.load %arg5[%c1_104, %c6_105] : memref<6x8xf32, #tpu.memory_space<smem>>
    %157 = vector.broadcast %156 : f32 to vector<2x128xf32>
    %158 = arith.select %155, %157, %149 : vector<2x128xi1>, vector<2x128xf32>
    %c1_106 = arith.constant 1 : index
    %c6_107 = arith.constant 6 : index
    %159 = memref.load %arg6[%c1_106, %c6_107] : memref<6x8xi32, #tpu.memory_space<smem>>
    %160 = vector.broadcast %159 : i32 to vector<2x128xi32>
    %161 = arith.select %155, %160, %152 : vector<2x128xi1>, vector<2x128xi32>
    %c1_108 = arith.constant 1 : index
    %c6_109 = arith.constant 6 : index
    %162 = memref.load %arg4[%c1_108, %c6_109] : memref<6x7xf32, #tpu.memory_space<smem>>
    %163 = vector.broadcast %162 : f32 to vector<2x128xf32>
    %164 = arith.cmpf ogt, %103, %163 : vector<2x128xf32>
    %c1_110 = arith.constant 1 : index
    %c7_111 = arith.constant 7 : index
    %165 = memref.load %arg5[%c1_110, %c7_111] : memref<6x8xf32, #tpu.memory_space<smem>>
    %166 = vector.broadcast %165 : f32 to vector<2x128xf32>
    %167 = arith.select %164, %166, %158 : vector<2x128xi1>, vector<2x128xf32>
    %c1_112 = arith.constant 1 : index
    %c7_113 = arith.constant 7 : index
    %168 = memref.load %arg6[%c1_112, %c7_113] : memref<6x8xi32, #tpu.memory_space<smem>>
    %169 = vector.broadcast %168 : i32 to vector<2x128xi32>
    %170 = arith.select %164, %169, %161 : vector<2x128xi1>, vector<2x128xi32>
    %c0_114 = arith.constant 0 : index
    %c1_115 = arith.constant 1 : index
    %c0_116 = arith.constant 0 : index
    %c0_117 = arith.constant 0 : index
    %171 = vector.load %arg7[%c0_114, %c1_115, %c0_116, %c0_117] : memref<1x6x2x128xf32, #tpu.memory_space<vmem>>, vector<1x1x2x128xf32>
    %172 = vector.shape_cast %171 : vector<1x1x2x128xf32> to vector<2x128xf32>
    %173 = vector.shape_cast %167 : vector<2x128xf32> to vector<1x1x2x128xf32>
    tpu.vector_store %arg7[%c0_114, %c1_115, %c0_116, %c0_117], %173 {strides = array<i32>} : memref<1x6x2x128xf32, #tpu.memory_space<vmem>>, vector<1x1x2x128xf32>,
    %174 = arith.addi %96, %170 : vector<2x128xi32>
    %175 = arith.mulf %5, %25 : vector<2x128xf32>
    %c2_118 = arith.constant 2 : index
    %176 = memref.load %arg3[%c2_118] : memref<6xf32, #tpu.memory_space<smem>>
    %177 = vector.broadcast %176 : f32 to vector<2x128xf32>
    %178 = arith.mulf %175, %177 : vector<2x128xf32>
    %c2_119 = arith.constant 2 : index
    %c0_120 = arith.constant 0 : index
    %179 = memref.load %arg5[%c2_119, %c0_120] : memref<6x8xf32, #tpu.memory_space<smem>>
    %180 = vector.broadcast %179 : f32 to vector<2x128xf32>
    %c2_121 = arith.constant 2 : index
    %c0_122 = arith.constant 0 : index
    %181 = memref.load %arg6[%c2_121, %c0_122] : memref<6x8xi32, #tpu.memory_space<smem>>
    %182 = vector.broadcast %181 : i32 to vector<2x128xi32>
    %c2_123 = arith.constant 2 : index
    %c0_124 = arith.constant 0 : index
    %183 = memref.load %arg4[%c2_123, %c0_124] : memref<6x7xf32, #tpu.memory_space<smem>>
    %184 = vector.broadcast %183 : f32 to vector<2x128xf32>
    %185 = arith.cmpf ogt, %178, %184 : vector<2x128xf32>
    %c2_125 = arith.constant 2 : index
    %c1_126 = arith.constant 1 : index
    %186 = memref.load %arg5[%c2_125, %c1_126] : memref<6x8xf32, #tpu.memory_space<smem>>
    %187 = vector.broadcast %186 : f32 to vector<2x128xf32>
    %188 = arith.select %185, %187, %180 : vector<2x128xi1>, vector<2x128xf32>
    %c2_127 = arith.constant 2 : index
    %c1_128 = arith.constant 1 : index
    %189 = memref.load %arg6[%c2_127, %c1_128] : memref<6x8xi32, #tpu.memory_space<smem>>
    %190 = vector.broadcast %189 : i32 to vector<2x128xi32>
    %191 = arith.select %185, %190, %182 : vector<2x128xi1>, vector<2x128xi32>
    %c2_129 = arith.constant 2 : index
    %c1_130 = arith.constant 1 : index
    %192 = memref.load %arg4[%c2_129, %c1_130] : memref<6x7xf32, #tpu.memory_space<smem>>
    %193 = vector.broadcast %192 : f32 to vector<2x128xf32>
    %194 = arith.cmpf ogt, %178, %193 : vector<2x128xf32>
    %c2_131 = arith.constant 2 : index
    %c2_132 = arith.constant 2 : index
    %195 = memref.load %arg5[%c2_131, %c2_132] : memref<6x8xf32, #tpu.memory_space<smem>>
    %196 = vector.broadcast %195 : f32 to vector<2x128xf32>
    %197 = arith.select %194, %196, %188 : vector<2x128xi1>, vector<2x128xf32>
    %c2_133 = arith.constant 2 : index
    %c2_134 = arith.constant 2 : index
    %198 = memref.load %arg6[%c2_133, %c2_134] : memref<6x8xi32, #tpu.memory_space<smem>>
    %199 = vector.broadcast %198 : i32 to vector<2x128xi32>
    %200 = arith.select %194, %199, %191 : vector<2x128xi1>, vector<2x128xi32>
    %c2_135 = arith.constant 2 : index
    %c2_136 = arith.constant 2 : index
    %201 = memref.load %arg4[%c2_135, %c2_136] : memref<6x7xf32, #tpu.memory_space<smem>>
    %202 = vector.broadcast %201 : f32 to vector<2x128xf32>
    %203 = arith.cmpf ogt, %178, %202 : vector<2x128xf32>
    %c2_137 = arith.constant 2 : index
    %c3_138 = arith.constant 3 : index
    %204 = memref.load %arg5[%c2_137, %c3_138] : memref<6x8xf32, #tpu.memory_space<smem>>
    %205 = vector.broadcast %204 : f32 to vector<2x128xf32>
    %206 = arith.select %203, %205, %197 : vector<2x128xi1>, vector<2x128xf32>
    %c2_139 = arith.constant 2 : index
    %c3_140 = arith.constant 3 : index
    %207 = memref.load %arg6[%c2_139, %c3_140] : memref<6x8xi32, #tpu.memory_space<smem>>
    %208 = vector.broadcast %207 : i32 to vector<2x128xi32>
    %209 = arith.select %203, %208, %200 : vector<2x128xi1>, vector<2x128xi32>
    %c2_141 = arith.constant 2 : index
    %c3_142 = arith.constant 3 : index
    %210 = memref.load %arg4[%c2_141, %c3_142] : memref<6x7xf32, #tpu.memory_space<smem>>
    %211 = vector.broadcast %210 : f32 to vector<2x128xf32>
    %212 = arith.cmpf ogt, %178, %211 : vector<2x128xf32>
    %c2_143 = arith.constant 2 : index
    %c4_144 = arith.constant 4 : index
    %213 = memref.load %arg5[%c2_143, %c4_144] : memref<6x8xf32, #tpu.memory_space<smem>>
    %214 = vector.broadcast %213 : f32 to vector<2x128xf32>
    %215 = arith.select %212, %214, %206 : vector<2x128xi1>, vector<2x128xf32>
    %c2_145 = arith.constant 2 : index
    %c4_146 = arith.constant 4 : index
    %216 = memref.load %arg6[%c2_145, %c4_146] : memref<6x8xi32, #tpu.memory_space<smem>>
    %217 = vector.broadcast %216 : i32 to vector<2x128xi32>
    %218 = arith.select %212, %217, %209 : vector<2x128xi1>, vector<2x128xi32>
    %c2_147 = arith.constant 2 : index
    %c4_148 = arith.constant 4 : index
    %219 = memref.load %arg4[%c2_147, %c4_148] : memref<6x7xf32, #tpu.memory_space<smem>>
    %220 = vector.broadcast %219 : f32 to vector<2x128xf32>
    %221 = arith.cmpf ogt, %178, %220 : vector<2x128xf32>
    %c2_149 = arith.constant 2 : index
    %c5_150 = arith.constant 5 : index
    %222 = memref.load %arg5[%c2_149, %c5_150] : memref<6x8xf32, #tpu.memory_space<smem>>
    %223 = vector.broadcast %222 : f32 to vector<2x128xf32>
    %224 = arith.select %221, %223, %215 : vector<2x128xi1>, vector<2x128xf32>
    %c2_151 = arith.constant 2 : index
    %c5_152 = arith.constant 5 : index
    %225 = memref.load %arg6[%c2_151, %c5_152] : memref<6x8xi32, #tpu.memory_space<smem>>
    %226 = vector.broadcast %225 : i32 to vector<2x128xi32>
    %227 = arith.select %221, %226, %218 : vector<2x128xi1>, vector<2x128xi32>
    %c2_153 = arith.constant 2 : index
    %c5_154 = arith.constant 5 : index
    %228 = memref.load %arg4[%c2_153, %c5_154] : memref<6x7xf32, #tpu.memory_space<smem>>
    %229 = vector.broadcast %228 : f32 to vector<2x128xf32>
    %230 = arith.cmpf ogt, %178, %229 : vector<2x128xf32>
    %c2_155 = arith.constant 2 : index
    %c6_156 = arith.constant 6 : index
    %231 = memref.load %arg5[%c2_155, %c6_156] : memref<6x8xf32, #tpu.memory_space<smem>>
    %232 = vector.broadcast %231 : f32 to vector<2x128xf32>
    %233 = arith.select %230, %232, %224 : vector<2x128xi1>, vector<2x128xf32>
    %c2_157 = arith.constant 2 : index
    %c6_158 = arith.constant 6 : index
    %234 = memref.load %arg6[%c2_157, %c6_158] : memref<6x8xi32, #tpu.memory_space<smem>>
    %235 = vector.broadcast %234 : i32 to vector<2x128xi32>
    %236 = arith.select %230, %235, %227 : vector<2x128xi1>, vector<2x128xi32>
    %c2_159 = arith.constant 2 : index
    %c6_160 = arith.constant 6 : index
    %237 = memref.load %arg4[%c2_159, %c6_160] : memref<6x7xf32, #tpu.memory_space<smem>>
    %238 = vector.broadcast %237 : f32 to vector<2x128xf32>
    %239 = arith.cmpf ogt, %178, %238 : vector<2x128xf32>
    %c2_161 = arith.constant 2 : index
    %c7_162 = arith.constant 7 : index
    %240 = memref.load %arg5[%c2_161, %c7_162] : memref<6x8xf32, #tpu.memory_space<smem>>
    %241 = vector.broadcast %240 : f32 to vector<2x128xf32>
    %242 = arith.select %239, %241, %233 : vector<2x128xi1>, vector<2x128xf32>
    %c2_163 = arith.constant 2 : index
    %c7_164 = arith.constant 7 : index
    %243 = memref.load %arg6[%c2_163, %c7_164] : memref<6x8xi32, #tpu.memory_space<smem>>
    %244 = vector.broadcast %243 : i32 to vector<2x128xi32>
    %245 = arith.select %239, %244, %236 : vector<2x128xi1>, vector<2x128xi32>
    %c0_165 = arith.constant 0 : index
    %c2_166 = arith.constant 2 : index
    %c0_167 = arith.constant 0 : index
    %c0_168 = arith.constant 0 : index
    %246 = vector.load %arg7[%c0_165, %c2_166, %c0_167, %c0_168] : memref<1x6x2x128xf32, #tpu.memory_space<vmem>>, vector<1x1x2x128xf32>
    %247 = vector.shape_cast %246 : vector<1x1x2x128xf32> to vector<2x128xf32>
    %248 = vector.shape_cast %242 : vector<2x128xf32> to vector<1x1x2x128xf32>
    tpu.vector_store %arg7[%c0_165, %c2_166, %c0_167, %c0_168], %248 {strides = array<i32>} : memref<1x6x2x128xf32, #tpu.memory_space<vmem>>, vector<1x1x2x128xf32>,
    %249 = arith.addi %174, %245 : vector<2x128xi32>
    %250 = arith.mulf %7, %25 : vector<2x128xf32>
    %c3_169 = arith.constant 3 : index
    %251 = memref.load %arg3[%c3_169] : memref<6xf32, #tpu.memory_space<smem>>
    %252 = vector.broadcast %251 : f32 to vector<2x128xf32>
    %253 = arith.mulf %250, %252 : vector<2x128xf32>
    %c3_170 = arith.constant 3 : index
    %c0_171 = arith.constant 0 : index
    %254 = memref.load %arg5[%c3_170, %c0_171] : memref<6x8xf32, #tpu.memory_space<smem>>
    %255 = vector.broadcast %254 : f32 to vector<2x128xf32>
    %c3_172 = arith.constant 3 : index
    %c0_173 = arith.constant 0 : index
    %256 = memref.load %arg6[%c3_172, %c0_173] : memref<6x8xi32, #tpu.memory_space<smem>>
    %257 = vector.broadcast %256 : i32 to vector<2x128xi32>
    %c3_174 = arith.constant 3 : index
    %c0_175 = arith.constant 0 : index
    %258 = memref.load %arg4[%c3_174, %c0_175] : memref<6x7xf32, #tpu.memory_space<smem>>
    %259 = vector.broadcast %258 : f32 to vector<2x128xf32>
    %260 = arith.cmpf ogt, %253, %259 : vector<2x128xf32>
    %c3_176 = arith.constant 3 : index
    %c1_177 = arith.constant 1 : index
    %261 = memref.load %arg5[%c3_176, %c1_177] : memref<6x8xf32, #tpu.memory_space<smem>>
    %262 = vector.broadcast %261 : f32 to vector<2x128xf32>
    %263 = arith.select %260, %262, %255 : vector<2x128xi1>, vector<2x128xf32>
    %c3_178 = arith.constant 3 : index
    %c1_179 = arith.constant 1 : index
    %264 = memref.load %arg6[%c3_178, %c1_179] : memref<6x8xi32, #tpu.memory_space<smem>>
    %265 = vector.broadcast %264 : i32 to vector<2x128xi32>
    %266 = arith.select %260, %265, %257 : vector<2x128xi1>, vector<2x128xi32>
    %c3_180 = arith.constant 3 : index
    %c1_181 = arith.constant 1 : index
    %267 = memref.load %arg4[%c3_180, %c1_181] : memref<6x7xf32, #tpu.memory_space<smem>>
    %268 = vector.broadcast %267 : f32 to vector<2x128xf32>
    %269 = arith.cmpf ogt, %253, %268 : vector<2x128xf32>
    %c3_182 = arith.constant 3 : index
    %c2_183 = arith.constant 2 : index
    %270 = memref.load %arg5[%c3_182, %c2_183] : memref<6x8xf32, #tpu.memory_space<smem>>
    %271 = vector.broadcast %270 : f32 to vector<2x128xf32>
    %272 = arith.select %269, %271, %263 : vector<2x128xi1>, vector<2x128xf32>
    %c3_184 = arith.constant 3 : index
    %c2_185 = arith.constant 2 : index
    %273 = memref.load %arg6[%c3_184, %c2_185] : memref<6x8xi32, #tpu.memory_space<smem>>
    %274 = vector.broadcast %273 : i32 to vector<2x128xi32>
    %275 = arith.select %269, %274, %266 : vector<2x128xi1>, vector<2x128xi32>
    %c3_186 = arith.constant 3 : index
    %c2_187 = arith.constant 2 : index
    %276 = memref.load %arg4[%c3_186, %c2_187] : memref<6x7xf32, #tpu.memory_space<smem>>
    %277 = vector.broadcast %276 : f32 to vector<2x128xf32>
    %278 = arith.cmpf ogt, %253, %277 : vector<2x128xf32>
    %c3_188 = arith.constant 3 : index
    %c3_189 = arith.constant 3 : index
    %279 = memref.load %arg5[%c3_188, %c3_189] : memref<6x8xf32, #tpu.memory_space<smem>>
    %280 = vector.broadcast %279 : f32 to vector<2x128xf32>
    %281 = arith.select %278, %280, %272 : vector<2x128xi1>, vector<2x128xf32>
    %c3_190 = arith.constant 3 : index
    %c3_191 = arith.constant 3 : index
    %282 = memref.load %arg6[%c3_190, %c3_191] : memref<6x8xi32, #tpu.memory_space<smem>>
    %283 = vector.broadcast %282 : i32 to vector<2x128xi32>
    %284 = arith.select %278, %283, %275 : vector<2x128xi1>, vector<2x128xi32>
    %c3_192 = arith.constant 3 : index
    %c3_193 = arith.constant 3 : index
    %285 = memref.load %arg4[%c3_192, %c3_193] : memref<6x7xf32, #tpu.memory_space<smem>>
    %286 = vector.broadcast %285 : f32 to vector<2x128xf32>
    %287 = arith.cmpf ogt, %253, %286 : vector<2x128xf32>
    %c3_194 = arith.constant 3 : index
    %c4_195 = arith.constant 4 : index
    %288 = memref.load %arg5[%c3_194, %c4_195] : memref<6x8xf32, #tpu.memory_space<smem>>
    %289 = vector.broadcast %288 : f32 to vector<2x128xf32>
    %290 = arith.select %287, %289, %281 : vector<2x128xi1>, vector<2x128xf32>
    %c3_196 = arith.constant 3 : index
    %c4_197 = arith.constant 4 : index
    %291 = memref.load %arg6[%c3_196, %c4_197] : memref<6x8xi32, #tpu.memory_space<smem>>
    %292 = vector.broadcast %291 : i32 to vector<2x128xi32>
    %293 = arith.select %287, %292, %284 : vector<2x128xi1>, vector<2x128xi32>
    %c0_198 = arith.constant 0 : index
    %c3_199 = arith.constant 3 : index
    %c0_200 = arith.constant 0 : index
    %c0_201 = arith.constant 0 : index
    %294 = vector.load %arg7[%c0_198, %c3_199, %c0_200, %c0_201] : memref<1x6x2x128xf32, #tpu.memory_space<vmem>>, vector<1x1x2x128xf32>
    %295 = vector.shape_cast %294 : vector<1x1x2x128xf32> to vector<2x128xf32>
    %296 = vector.shape_cast %290 : vector<2x128xf32> to vector<1x1x2x128xf32>
    tpu.vector_store %arg7[%c0_198, %c3_199, %c0_200, %c0_201], %296 {strides = array<i32>} : memref<1x6x2x128xf32, #tpu.memory_space<vmem>>, vector<1x1x2x128xf32>,
    %297 = arith.addi %249, %293 : vector<2x128xi32>
    %298 = arith.mulf %9, %25 : vector<2x128xf32>
    %c4_202 = arith.constant 4 : index
    %299 = memref.load %arg3[%c4_202] : memref<6xf32, #tpu.memory_space<smem>>
    %300 = vector.broadcast %299 : f32 to vector<2x128xf32>
    %301 = arith.mulf %298, %300 : vector<2x128xf32>
    %c4_203 = arith.constant 4 : index
    %c0_204 = arith.constant 0 : index
    %302 = memref.load %arg5[%c4_203, %c0_204] : memref<6x8xf32, #tpu.memory_space<smem>>
    %303 = vector.broadcast %302 : f32 to vector<2x128xf32>
    %c4_205 = arith.constant 4 : index
    %c0_206 = arith.constant 0 : index
    %304 = memref.load %arg6[%c4_205, %c0_206] : memref<6x8xi32, #tpu.memory_space<smem>>
    %305 = vector.broadcast %304 : i32 to vector<2x128xi32>
    %c4_207 = arith.constant 4 : index
    %c0_208 = arith.constant 0 : index
    %306 = memref.load %arg4[%c4_207, %c0_208] : memref<6x7xf32, #tpu.memory_space<smem>>
    %307 = vector.broadcast %306 : f32 to vector<2x128xf32>
    %308 = arith.cmpf ogt, %301, %307 : vector<2x128xf32>
    %c4_209 = arith.constant 4 : index
    %c1_210 = arith.constant 1 : index
    %309 = memref.load %arg5[%c4_209, %c1_210] : memref<6x8xf32, #tpu.memory_space<smem>>
    %310 = vector.broadcast %309 : f32 to vector<2x128xf32>
    %311 = arith.select %308, %310, %303 : vector<2x128xi1>, vector<2x128xf32>
    %c4_211 = arith.constant 4 : index
    %c1_212 = arith.constant 1 : index
    %312 = memref.load %arg6[%c4_211, %c1_212] : memref<6x8xi32, #tpu.memory_space<smem>>
    %313 = vector.broadcast %312 : i32 to vector<2x128xi32>
    %314 = arith.select %308, %313, %305 : vector<2x128xi1>, vector<2x128xi32>
    %c4_213 = arith.constant 4 : index
    %c1_214 = arith.constant 1 : index
    %315 = memref.load %arg4[%c4_213, %c1_214] : memref<6x7xf32, #tpu.memory_space<smem>>
    %316 = vector.broadcast %315 : f32 to vector<2x128xf32>
    %317 = arith.cmpf ogt, %301, %316 : vector<2x128xf32>
    %c4_215 = arith.constant 4 : index
    %c2_216 = arith.constant 2 : index
    %318 = memref.load %arg5[%c4_215, %c2_216] : memref<6x8xf32, #tpu.memory_space<smem>>
    %319 = vector.broadcast %318 : f32 to vector<2x128xf32>
    %320 = arith.select %317, %319, %311 : vector<2x128xi1>, vector<2x128xf32>
    %c4_217 = arith.constant 4 : index
    %c2_218 = arith.constant 2 : index
    %321 = memref.load %arg6[%c4_217, %c2_218] : memref<6x8xi32, #tpu.memory_space<smem>>
    %322 = vector.broadcast %321 : i32 to vector<2x128xi32>
    %323 = arith.select %317, %322, %314 : vector<2x128xi1>, vector<2x128xi32>
    %c4_219 = arith.constant 4 : index
    %c2_220 = arith.constant 2 : index
    %324 = memref.load %arg4[%c4_219, %c2_220] : memref<6x7xf32, #tpu.memory_space<smem>>
    %325 = vector.broadcast %324 : f32 to vector<2x128xf32>
    %326 = arith.cmpf ogt, %301, %325 : vector<2x128xf32>
    %c4_221 = arith.constant 4 : index
    %c3_222 = arith.constant 3 : index
    %327 = memref.load %arg5[%c4_221, %c3_222] : memref<6x8xf32, #tpu.memory_space<smem>>
    %328 = vector.broadcast %327 : f32 to vector<2x128xf32>
    %329 = arith.select %326, %328, %320 : vector<2x128xi1>, vector<2x128xf32>
    %c4_223 = arith.constant 4 : index
    %c3_224 = arith.constant 3 : index
    %330 = memref.load %arg6[%c4_223, %c3_224] : memref<6x8xi32, #tpu.memory_space<smem>>
    %331 = vector.broadcast %330 : i32 to vector<2x128xi32>
    %332 = arith.select %326, %331, %323 : vector<2x128xi1>, vector<2x128xi32>
    %c4_225 = arith.constant 4 : index
    %c3_226 = arith.constant 3 : index
    %333 = memref.load %arg4[%c4_225, %c3_226] : memref<6x7xf32, #tpu.memory_space<smem>>
    %334 = vector.broadcast %333 : f32 to vector<2x128xf32>
    %335 = arith.cmpf ogt, %301, %334 : vector<2x128xf32>
    %c4_227 = arith.constant 4 : index
    %c4_228 = arith.constant 4 : index
    %336 = memref.load %arg5[%c4_227, %c4_228] : memref<6x8xf32, #tpu.memory_space<smem>>
    %337 = vector.broadcast %336 : f32 to vector<2x128xf32>
    %338 = arith.select %335, %337, %329 : vector<2x128xi1>, vector<2x128xf32>
    %c4_229 = arith.constant 4 : index
    %c4_230 = arith.constant 4 : index
    %339 = memref.load %arg6[%c4_229, %c4_230] : memref<6x8xi32, #tpu.memory_space<smem>>
    %340 = vector.broadcast %339 : i32 to vector<2x128xi32>
    %341 = arith.select %335, %340, %332 : vector<2x128xi1>, vector<2x128xi32>
    %c0_231 = arith.constant 0 : index
    %c4_232 = arith.constant 4 : index
    %c0_233 = arith.constant 0 : index
    %c0_234 = arith.constant 0 : index
    %342 = vector.load %arg7[%c0_231, %c4_232, %c0_233, %c0_234] : memref<1x6x2x128xf32, #tpu.memory_space<vmem>>, vector<1x1x2x128xf32>
    %343 = vector.shape_cast %342 : vector<1x1x2x128xf32> to vector<2x128xf32>
    %344 = vector.shape_cast %338 : vector<2x128xf32> to vector<1x1x2x128xf32>
    tpu.vector_store %arg7[%c0_231, %c4_232, %c0_233, %c0_234], %344 {strides = array<i32>} : memref<1x6x2x128xf32, #tpu.memory_space<vmem>>, vector<1x1x2x128xf32>,
    %345 = arith.addi %297, %341 : vector<2x128xi32>
    %346 = arith.mulf %11, %25 : vector<2x128xf32>
    %c5_235 = arith.constant 5 : index
    %347 = memref.load %arg3[%c5_235] : memref<6xf32, #tpu.memory_space<smem>>
    %348 = vector.broadcast %347 : f32 to vector<2x128xf32>
    %349 = arith.mulf %346, %348 : vector<2x128xf32>
    %c5_236 = arith.constant 5 : index
    %c0_237 = arith.constant 0 : index
    %350 = memref.load %arg5[%c5_236, %c0_237] : memref<6x8xf32, #tpu.memory_space<smem>>
    %351 = vector.broadcast %350 : f32 to vector<2x128xf32>
    %c5_238 = arith.constant 5 : index
    %c0_239 = arith.constant 0 : index
    %352 = memref.load %arg6[%c5_238, %c0_239] : memref<6x8xi32, #tpu.memory_space<smem>>
    %353 = vector.broadcast %352 : i32 to vector<2x128xi32>
    %c5_240 = arith.constant 5 : index
    %c0_241 = arith.constant 0 : index
    %354 = memref.load %arg4[%c5_240, %c0_241] : memref<6x7xf32, #tpu.memory_space<smem>>
    %355 = vector.broadcast %354 : f32 to vector<2x128xf32>
    %356 = arith.cmpf ogt, %349, %355 : vector<2x128xf32>
    %c5_242 = arith.constant 5 : index
    %c1_243 = arith.constant 1 : index
    %357 = memref.load %arg5[%c5_242, %c1_243] : memref<6x8xf32, #tpu.memory_space<smem>>
    %358 = vector.broadcast %357 : f32 to vector<2x128xf32>
    %359 = arith.select %356, %358, %351 : vector<2x128xi1>, vector<2x128xf32>
    %c5_244 = arith.constant 5 : index
    %c1_245 = arith.constant 1 : index
    %360 = memref.load %arg6[%c5_244, %c1_245] : memref<6x8xi32, #tpu.memory_space<smem>>
    %361 = vector.broadcast %360 : i32 to vector<2x128xi32>
    %362 = arith.select %356, %361, %353 : vector<2x128xi1>, vector<2x128xi32>
    %c5_246 = arith.constant 5 : index
    %c1_247 = arith.constant 1 : index
    %363 = memref.load %arg4[%c5_246, %c1_247] : memref<6x7xf32, #tpu.memory_space<smem>>
    %364 = vector.broadcast %363 : f32 to vector<2x128xf32>
    %365 = arith.cmpf ogt, %349, %364 : vector<2x128xf32>
    %c5_248 = arith.constant 5 : index
    %c2_249 = arith.constant 2 : index
    %366 = memref.load %arg5[%c5_248, %c2_249] : memref<6x8xf32, #tpu.memory_space<smem>>
    %367 = vector.broadcast %366 : f32 to vector<2x128xf32>
    %368 = arith.select %365, %367, %359 : vector<2x128xi1>, vector<2x128xf32>
    %c5_250 = arith.constant 5 : index
    %c2_251 = arith.constant 2 : index
    %369 = memref.load %arg6[%c5_250, %c2_251] : memref<6x8xi32, #tpu.memory_space<smem>>
    %370 = vector.broadcast %369 : i32 to vector<2x128xi32>
    %371 = arith.select %365, %370, %362 : vector<2x128xi1>, vector<2x128xi32>
    %c5_252 = arith.constant 5 : index
    %c2_253 = arith.constant 2 : index
    %372 = memref.load %arg4[%c5_252, %c2_253] : memref<6x7xf32, #tpu.memory_space<smem>>
    %373 = vector.broadcast %372 : f32 to vector<2x128xf32>
    %374 = arith.cmpf ogt, %349, %373 : vector<2x128xf32>
    %c5_254 = arith.constant 5 : index
    %c3_255 = arith.constant 3 : index
    %375 = memref.load %arg5[%c5_254, %c3_255] : memref<6x8xf32, #tpu.memory_space<smem>>
    %376 = vector.broadcast %375 : f32 to vector<2x128xf32>
    %377 = arith.select %374, %376, %368 : vector<2x128xi1>, vector<2x128xf32>
    %c5_256 = arith.constant 5 : index
    %c3_257 = arith.constant 3 : index
    %378 = memref.load %arg6[%c5_256, %c3_257] : memref<6x8xi32, #tpu.memory_space<smem>>
    %379 = vector.broadcast %378 : i32 to vector<2x128xi32>
    %380 = arith.select %374, %379, %371 : vector<2x128xi1>, vector<2x128xi32>
    %c5_258 = arith.constant 5 : index
    %c3_259 = arith.constant 3 : index
    %381 = memref.load %arg4[%c5_258, %c3_259] : memref<6x7xf32, #tpu.memory_space<smem>>
    %382 = vector.broadcast %381 : f32 to vector<2x128xf32>
    %383 = arith.cmpf ogt, %349, %382 : vector<2x128xf32>
    %c5_260 = arith.constant 5 : index
    %c4_261 = arith.constant 4 : index
    %384 = memref.load %arg5[%c5_260, %c4_261] : memref<6x8xf32, #tpu.memory_space<smem>>
    %385 = vector.broadcast %384 : f32 to vector<2x128xf32>
    %386 = arith.select %383, %385, %377 : vector<2x128xi1>, vector<2x128xf32>
    %c5_262 = arith.constant 5 : index
    %c4_263 = arith.constant 4 : index
    %387 = memref.load %arg6[%c5_262, %c4_263] : memref<6x8xi32, #tpu.memory_space<smem>>
    %388 = vector.broadcast %387 : i32 to vector<2x128xi32>
    %389 = arith.select %383, %388, %380 : vector<2x128xi1>, vector<2x128xi32>
    %c0_264 = arith.constant 0 : index
    %c5_265 = arith.constant 5 : index
    %c0_266 = arith.constant 0 : index
    %c0_267 = arith.constant 0 : index
    %390 = vector.load %arg7[%c0_264, %c5_265, %c0_266, %c0_267] : memref<1x6x2x128xf32, #tpu.memory_space<vmem>>, vector<1x1x2x128xf32>
    %391 = vector.shape_cast %390 : vector<1x1x2x128xf32> to vector<2x128xf32>
    %392 = vector.shape_cast %386 : vector<2x128xf32> to vector<1x1x2x128xf32>
    tpu.vector_store %arg7[%c0_264, %c5_265, %c0_266, %c0_267], %392 {strides = array<i32>} : memref<1x6x2x128xf32, #tpu.memory_space<vmem>>, vector<1x1x2x128xf32>,
    %393 = arith.addi %345, %389 : vector<2x128xi32>
    %c0_268 = arith.constant 0 : index
    %c0_269 = arith.constant 0 : index
    %c0_270 = arith.constant 0 : index
    %394 = vector.load %arg8[%c0_268, %c0_269, %c0_270] : memref<1x2x128xi32, #tpu.memory_space<vmem>>, vector<1x2x128xi32>
    %395 = vector.shape_cast %394 : vector<1x2x128xi32> to vector<2x128xi32>
    %396 = vector.shape_cast %393 : vector<2x128xi32> to vector<1x2x128xi32>
    tpu.vector_store %arg8[%c0_268, %c0_269, %c0_270], %396 {strides = array<i32>} : memref<1x2x128xi32, #tpu.memory_space<vmem>>, vector<1x2x128xi32>,
    return
  }
  func.func @transform_0(%arg0: i32, %arg1: i32) -> (i32, i32, i32, i32) {
    %c0_i32 = arith.constant 0 : i32
    %c0_i32_0 = arith.constant 0 : i32
    %c0_i32_1 = arith.constant 0 : i32
    return %arg0, %c0_i32, %arg1, %c0_i32_0 : i32, i32, i32, i32
  }
  func.func @transform_1(%arg0: i32, %arg1: i32) -> i32 {
    %c0_i32 = arith.constant 0 : i32
    %c0_i32_0 = arith.constant 0 : i32
    return %c0_i32 : i32
  }
  func.func @transform_2(%arg0: i32, %arg1: i32) -> (i32, i32) {
    %c0_i32 = arith.constant 0 : i32
    %c0_i32_0 = arith.constant 0 : i32
    %c0_i32_1 = arith.constant 0 : i32
    return %c0_i32, %c0_i32_0 : i32, i32
  }
  func.func @transform_3(%arg0: i32, %arg1: i32) -> (i32, i32) {
    %c0_i32 = arith.constant 0 : i32
    %c0_i32_0 = arith.constant 0 : i32
    %c0_i32_1 = arith.constant 0 : i32
    return %c0_i32, %c0_i32_0 : i32, i32
  }
  func.func @transform_4(%arg0: i32, %arg1: i32) -> (i32, i32) {
    %c0_i32 = arith.constant 0 : i32
    %c0_i32_0 = arith.constant 0 : i32
    %c0_i32_1 = arith.constant 0 : i32
    return %c0_i32, %c0_i32_0 : i32, i32
  }
  func.func @transform_5(%arg0: i32, %arg1: i32) -> (i32, i32, i32, i32) {
    %c0_i32 = arith.constant 0 : i32
    %c0_i32_0 = arith.constant 0 : i32
    %c0_i32_1 = arith.constant 0 : i32
    return %arg0, %c0_i32, %arg1, %c0_i32_0 : i32, i32, i32, i32
  }
  func.func @transform_6(%arg0: i32, %arg1: i32) -> (i32, i32, i32) {
    %c0_i32 = arith.constant 0 : i32
    %c0_i32_0 = arith.constant 0 : i32
    return %arg0, %arg1, %c0_i32 : i32, i32, i32
  }
}

</mosaic_0001>

<llo_original>
// kernel: tpu_custom_call.1
$region0: #{tpu_custom_call.1}
  #allocation0 [shape = 'u32[]', space=smem, size = 0x4, offset = 0x4, fixed_abs, tag = 'smem constant byte address 0x4 - core index']
  #allocation1 [shape = 'u32[144,128]{1,0:T(1,128)}', space=vmem, size = 0x12000, scoped, tag = 'internal scratch']
  %s0 = inlined_call_operand.hbm [shape: f32[2,6,2,128], index: 0, kind: input, shape index: {}]
  %s1 = inlined_call_operand.vmem [shape: f32[6], index: 1, kind: input, shape index: {}]
  %s2 = inlined_call_operand.hbm [shape: f32[6,7], index: 2, kind: input, shape index: {}]
  %s3 = inlined_call_operand.hbm [shape: f32[6,8], index: 3, kind: input, shape index: {}]
  %s4 = inlined_call_operand.hbm [shape: s32[6,8], index: 4, kind: input, shape index: {}]
  %s5 = inlined_call_operand.hbm [shape: f32[2,6,2,128], index: 5, kind: output, shape index: {0}]
  %s6 = inlined_call_operand.hbm [shape: s32[2,2,128], index: 6, kind: output, shape index: {1}]
  %7 = xla_tuple %s5, %s6
  %s8 = sld [smem:[#allocation0]]
  $region81: #{tpu_custom_call.1} parent=0
    _
  %s10 = ssub.s32 1, %s8
  %s11 = scalar_select 0, %s10, %s8
  $region1: #{tpu_custom_call.1} parent=0
    #allocation2 [shape = 'u8[12288]{0}', space=vmem, size = 0x3000, scoped, tag = 'input window, operand 0']
    #allocation3 [shape = 's32[2]{0}', space=sflag, size = 0x8, scoped, tag = 'scoped memory for tpu_custom_call.1']
    #allocation4 [shape = 's32[2]{0}', space=sflag, size = 0x8, scoped, tag = 'scoped memory for tpu_custom_call.1']
    #allocation5 [shape = 's32[2]{0}', space=sflag, size = 0x8, scoped, tag = 'scoped memory for tpu_custom_call.1']
    #allocation6 [shape = 's32[2]{0}', space=sflag, size = 0x8, scoped, tag = 'scoped memory for tpu_custom_call.1']
    #allocation7 [shape = 'u8[512]{0}', space=smem, size = 0x200, scoped, tag = 'input window, operand 1, single buffered']
    #allocation8 [shape = 'u8[4096]{0}', space=smem, size = 0x1000, scoped, tag = 'input window, operand 2, single buffered']
    #allocation9 [shape = 'u8[4096]{0}', space=smem, size = 0x1000, scoped, tag = 'input window, operand 3, single buffered']
    #allocation10 [shape = 's32[1]{0}', space=sflag, size = 0x4, scoped, tag = 'scoped memory for tpu_custom_call.1']
    #allocation11 [shape = 'u8[4096]{0}', space=smem, size = 0x1000, scoped, tag = 'input window, operand 4, single buffered']
    #allocation12 [shape = 'u8[12288]{0}', space=vmem, size = 0x3000, scoped, tag = 'output window, operand 0']
    #allocation13 [shape = 'u8[2048]{0}', space=vmem, size = 0x800, scoped, tag = 'output window, operand 1']
    #allocation14 [shape = 's32[2]{0}', space=sflag, size = 0x8, scoped, tag = 'scoped memory for tpu_custom_call.1']
    %12 = vsyncpa [#allocation3], 0
    %s13 = scalar_lea.sflag [#allocation3], 1
    %14 = vsyncpa %s13, 0
    %15 = vsyncpa [#allocation6], 0
    %16 = vsyncpa [#allocation5], 0
    %17 = vsyncpa [#allocation10], 0
    %18 = vsyncpa [#allocation4], 0
    %s19 = scalar_lea.sflag [#allocation4], 1
    %20 = vsyncpa %s19, 0
    %21 = vsyncpa [#allocation14], 0
    %s22 = scalar_lea.sflag [#allocation14], 1
    %23 = vsyncpa %s22, 0
    loop: start=0, step=1, limit=4
    $region2: #{tpu_custom_call.1} parent=1 // loop_pre_header
      _
    $region3: #{tpu_custom_call.1} parent=1 // loop_header
      %s25 = sphi 0, %s29
      %p26 = scmp.ge.s32.totalorder %s25, 4
      %s32 = sphi 0, %s44
      %s33 = sphi 0, %s40
      %s34 = sphi 0, %s32
      %s35 = sphi 0, %s33
      %s36 = sphi 0, %s34
      %s37 = sphi 0, %s35
      %s49 = sphi 0, %s51
      %s52 = sphi 0, %s49
      %s53 = sphi 0, %s52
      %s69 = sphi 0, %s53
      %s73 = sphi 0, %s73
      %s75 = sphi 0, %s73
      %s76 = sphi 0, %s75
      %s90 = sphi 0, %s76
      %s94 = sphi 0, %s94
      %s96 = sphi 0, %s94
      %s97 = sphi 0, %s96
      %s111 = sphi 0, %s97
      %s115 = sphi 0, %s115
      %s117 = sphi 0, %s115
      %s118 = sphi 0, %s117
      %s132 = sphi 0, %s118
      %s136 = sphi 0, %s136
      %s138 = sphi 0, %s136
      %s139 = sphi 0, %s138
      %s153 = sphi 0, %s139
      %s161 = sphi 0, %s163
      %s164 = sphi 0, %s161
      %s165 = sphi 0, %s164
      %s181 = sphi 0, %s165
      %s189 = sphi 0, %s191
      %s192 = sphi 0, %s189
      %s193 = sphi 0, %s192
      %s209 = sphi 0, %s193
    $region4: #{tpu_custom_call.1} parent=1 // loop_header_branch
      %28 = sbr.rel (%p26) target = $region8
    $region5: #{tpu_custom_call.1} parent=1 // loop_body
      %s30 = ssub.s32 %s25, 1
      %s31 = ssub.s32 %s25, 2
      %s38 = sadd.s32 1, %s33
      %p39 = scmp.ge.s32.totalorder %s38, 1
      %s40 = scalar_select %p39, 0, %s38
      %s41 = sadd.s32 1, %s32
      %s42 = scalar_select %p39, %s41, %s32
      %p43 = scmp.ge.s32.totalorder %s42, 2
      %s44 = scalar_select %p43, 0, %s42
      %s45 = ssub.s32 %s32, %s44
      %s46 = ssub.s32 %s33, %s40
      %s47 = sor.u32 %s45, %s46
      %p48 = scmp.eq.s32.totalorder %s47, 0
      %s50 = sadd.s32 %s49, 1
      %s51 = scalar_select %p48, %s49, %s50
      %p54 = pneg %p48
      %p55 = scmp.eq.s32.totalorder %s25, 1
      %p56 = por %p54, %p55
      %p57 = scmp.ne.s32.totalorder %s49, %s52
      %p58 = scmp.eq.s32.totalorder %s25, 0
      %p59 = por %p57, %p58
      %p60 = scmp.ne.s32.totalorder %s49, %s52
      %p61 = scmp.eq.s32.totalorder %s30, 1
      %p62 = por %p60, %p61
      %p63 = scmp.ne.s32.totalorder %s52, %s53
      %p64 = scmp.eq.s32.totalorder %s30, 0
      %p65 = por %p63, %p64
      %p66 = scmp.ne.s32.totalorder %s52, %s53
      %p67 = scmp.eq.s32.totalorder %s31, 1
      %p68 = por %p66, %p67
      %p70 = scmp.ne.s32.totalorder %s53, %s69
      %p71 = scmp.eq.s32.totalorder %s31, 0
      %p72 = por %p70, %p71
      %s74 = sadd.s32 %s73, 1
      %p77 = scmp.eq.s32.totalorder %s25, 1
      %p78 = scmp.ne.s32.totalorder %s73, %s75
      %p79 = scmp.eq.s32.totalorder %s25, 0
      %p80 = por %p78, %p79
      %p81 = scmp.ne.s32.totalorder %s73, %s75
      %p82 = scmp.eq.s32.totalorder %s30, 1
      %p83 = por %p81, %p82
      %p84 = scmp.ne.s32.totalorder %s75, %s76
      %p85 = scmp.eq.s32.totalorder %s30, 0
      %p86 = por %p84, %p85
      %p87 = scmp.ne.s32.totalorder %s75, %s76
      %p88 = scmp.eq.s32.totalorder %s31, 1
      %p89 = por %p87, %p88
      %p91 = scmp.ne.s32.totalorder %s76, %s90
      %p92 = scmp.eq.s32.totalorder %s31, 0
      %p93 = por %p91, %p92
      %s95 = sadd.s32 %s94, 1
      %p98 = scmp.eq.s32.totalorder %s25, 1
      %p99 = scmp.ne.s32.totalorder %s94, %s96
      %p100 = scmp.eq.s32.totalorder %s25, 0
      %p101 = por %p99, %p100
      %p102 = scmp.ne.s32.totalorder %s94, %s96
      %p103 = scmp.eq.s32.totalorder %s30, 1
      %p104 = por %p102, %p103
      %p105 = scmp.ne.s32.totalorder %s96, %s97
      %p106 = scmp.eq.s32.totalorder %s30, 0
      %p107 = por %p105, %p106
      %p108 = scmp.ne.s32.totalorder %s96, %s97
      %p109 = scmp.eq.s32.totalorder %s31, 1
      %p110 = por %p108, %p109
      %p112 = scmp.ne.s32.totalorder %s97, %s111
      %p113 = scmp.eq.s32.totalorder %s31, 0
      %p114 = por %p112, %p113
      %s116 = sadd.s32 %s115, 1
      %p119 = scmp.eq.s32.totalorder %s25, 1
      %p120 = scmp.ne.s32.totalorder %s115, %s117
      %p121 = scmp.eq.s32.totalorder %s25, 0
      %p122 = por %p120, %p121
      %p123 = scmp.ne.s32.totalorder %s115, %s117
      %p124 = scmp.eq.s32.totalorder %s30, 1
      %p125 = por %p123, %p124
      %p126 = scmp.ne.s32.totalorder %s117, %s118
      %p127 = scmp.eq.s32.totalorder %s30, 0
      %p128 = por %p126, %p127
      %p129 = scmp.ne.s32.totalorder %s117, %s118
      %p130 = scmp.eq.s32.totalorder %s31, 1
      %p131 = por %p129, %p130
      %p133 = scmp.ne.s32.totalorder %s118, %s132
      %p134 = scmp.eq.s32.totalorder %s31, 0
      %p135 = por %p133, %p134
      %s137 = sadd.s32 %s136, 1
      %p140 = scmp.eq.s32.totalorder %s25, 1
      %p141 = scmp.ne.s32.totalorder %s136, %s138
      %p142 = scmp.eq.s32.totalorder %s25, 0
      %p143 = por %p141, %p142
      %p144 = scmp.ne.s32.totalorder %s136, %s138
      %p145 = scmp.eq.s32.totalorder %s30, 1
      %p146 = por %p144, %p145
      %p147 = scmp.ne.s32.totalorder %s138, %s139
      %p148 = scmp.eq.s32.totalorder %s30, 0
      %p149 = por %p147, %p148
      %p150 = scmp.ne.s32.totalorder %s138, %s139
      %p151 = scmp.eq.s32.totalorder %s31, 1
      %p152 = por %p150, %p151
      %p154 = scmp.ne.s32.totalorder %s139, %s153
      %p155 = scmp.eq.s32.totalorder %s31, 0
      %p156 = por %p154, %p155
      %s157 = ssub.s32 %s32, %s44
      %s158 = ssub.s32 %s33, %s40
      %s159 = sor.u32 %s157, %s158
      %p160 = scmp.eq.s32.totalorder %s159, 0
      %s162 = sadd.s32 %s161, 1
      %s163 = scalar_select %p160, %s161, %s162
      %p166 = pneg %p160
      %p167 = scmp.eq.s32.totalorder %s25, 1
      %p168 = por %p166, %p167
      %p169 = scmp.ne.s32.totalorder %s161, %s164
      %p170 = scmp.eq.s32.totalorder %s25, 0
      %p171 = por %p169, %p170
      %p172 = scmp.ne.s32.totalorder %s161, %s164
      %p173 = scmp.eq.s32.totalorder %s30, 1
      %p174 = por %p172, %p173
      %p175 = scmp.ne.s32.totalorder %s164, %s165
      %p176 = scmp.eq.s32.totalorder %s30, 0
      %p177 = por %p175, %p176
      %p178 = scmp.ne.s32.totalorder %s164, %s165
      %p179 = scmp.eq.s32.totalorder %s31, 1
      %p180 = por %p178, %p179
      %p182 = scmp.ne.s32.totalorder %s165, %s181
      %p183 = scmp.eq.s32.totalorder %s31, 0
      %p184 = por %p182, %p183
      %s185 = ssub.s32 %s32, %s44
      %s186 = ssub.s32 %s33, %s40
      %s187 = sor.u32 %s185, %s186
      %p188 = scmp.eq.s32.totalorder %s187, 0
      %s190 = sadd.s32 %s189, 1
      %s191 = scalar_select %p188, %s189, %s190
      %p194 = pneg %p188
      %p195 = scmp.eq.s32.totalorder %s25, 1
      %p196 = por %p194, %p195
      %p197 = scmp.ne.s32.totalorder %s189, %s192
      %p198 = scmp.eq.s32.totalorder %s25, 0
      %p199 = por %p197, %p198
      %p200 = scmp.ne.s32.totalorder %s189, %s192
      %p201 = scmp.eq.s32.totalorder %s30, 1
      %p202 = por %p200, %p201
      %p203 = scmp.ne.s32.totalorder %s192, %s193
      %p204 = scmp.eq.s32.totalorder %s30, 0
      %p205 = por %p203, %p204
      %p206 = scmp.ne.s32.totalorder %s192, %s193
      %p207 = scmp.eq.s32.totalorder %s31, 1
      %p208 = por %p206, %p207
      %p210 = scmp.ne.s32.totalorder %s193, %s209
      %p211 = scmp.eq.s32.totalorder %s31, 0
      %p212 = por %p210, %p211
      %p213 = scmp.le.s32.totalorder 1, %s25
      %p214 = scmp.lt.s32.totalorder %s25, 3
      %p215 = pnand %p213, %p214
      %p216 = pneg %p215
      // Predicated region
      $region9: #{tpu_custom_call.1} parent=5 // pred_check
        _
      $region10: #{tpu_custom_call.1} parent=5 // pred_check_branch
        %218 = sbr.rel (%p215) target = $region12
      $region11: #{tpu_custom_call.1} parent=5 // pred_region
        %s219 = ssub.s32 %s25, 1
        // Predicated region
        $region13: #{tpu_custom_call.1} parent=11 // pred_check
          %p220 = pneg %p86
        $region14: #{tpu_custom_call.1} parent=11 // pred_check_branch
          %222 = sbr.rel (%p220) target = $region16
        $region15: #{tpu_custom_call.1} parent=11 // pred_region
          %s224 = ssub.s32 16, 16
          %225 = vsyncadd [#allocation6], %s224
          %s227 = sshll.u32 %s1, 4
          %s228 = int_to_ptr.vmem [resolvable:$true] %s227
          %230 = dma.vmem_to_smem %s228, 16, [#allocation7], [#allocation6]
        $region16: #{tpu_custom_call.1} parent=11 // pred_fallthru
          _
        // Predicated region
        $region17: #{tpu_custom_call.1} parent=11 // pred_check
          %p231 = pneg %p107
        $region18: #{tpu_custom_call.1} parent=11 // pred_check_branch
          %233 = sbr.rel (%p231) target = $region20
        $region19: #{tpu_custom_call.1} parent=11 // pred_region
          %s235 = ssub.s32 128, 128
          %236 = vsyncadd [#allocation5], %s235
          %239 = dma.hbm_to_smem %s2, 128, [#allocation8], [#allocation5]
        $region20: #{tpu_custom_call.1} parent=11 // pred_fallthru
          _
        // Predicated region
        $region21: #{tpu_custom_call.1} parent=11 // pred_check
          %p240 = pneg %p128
        $region22: #{tpu_custom_call.1} parent=11 // pred_check_branch
          %242 = sbr.rel (%p240) target = $region24
        $region23: #{tpu_custom_call.1} parent=11 // pred_region
          %s244 = ssub.s32 128, 128
          %245 = vsyncadd [#allocation10], %s244
          %248 = dma.hbm_to_smem %s3, 128, [#allocation9], [#allocation10]
        $region24: #{tpu_custom_call.1} parent=11 // pred_fallthru
          _
        // Predicated region
        $region25: #{tpu_custom_call.1} parent=11 // pred_check
          %p249 = pneg %p149
        $region26: #{tpu_custom_call.1} parent=11 // pred_check_branch
          %251 = sbr.rel (%p249) target = $region28
        $region27: #{tpu_custom_call.1} parent=11 // pred_region
          %s253 = ssub.s32 128, 128
          %254 = vsyncadd [#allocation10], %s253
          %257 = dma.hbm_to_smem %s4, 128, [#allocation11], [#allocation10]
        $region28: #{tpu_custom_call.1} parent=11 // pred_fallthru
          _
      $region12: #{tpu_custom_call.1} parent=5 // pred_fallthru
        _
      %p258 = scmp.lt.s32.totalorder %s25, 2
      // Predicated region
      $region29: #{tpu_custom_call.1} parent=5 // pred_check
        %p259 = pneg %p258
      $region30: #{tpu_custom_call.1} parent=5 // pred_check_branch
        %261 = sbr.rel (%p259) target = $region32
      $region31: #{tpu_custom_call.1} parent=5 // pred_region
        // Predicated region
        $region33: #{tpu_custom_call.1} parent=31 // pred_check
          %p262 = pneg %p59
        $region34: #{tpu_custom_call.1} parent=31 // pred_check_branch
          %264 = sbr.rel (%p262) target = $region36
        $region35: #{tpu_custom_call.1} parent=31 // pred_region
          %s265 = sand.u32 %s49, 1
          %s266 = scalar_lea.sflag [#allocation3], %s265
          %s267 = sand.u32 %s49, 1
          %s268 = smul.addr %s267, 12
          %s269 = scalar_lea.vmem [#allocation2], %s268
          %s271 = ssub.s32 192, 192
          %272 = vsyncadd %s266, %s271
          %s273 = smul.addr %s32, 6
          %s274 = sadd.s32 %s33, %s273
          %s275 = smul.addr %s274, 32
          %s276 = scalar_lea.hbm %s0, %s275
          %s277 = sshll.u32 %s269, 4
          %s278 = int_to_ptr.vmem [resolvable:$true] %s277
          %283 = dma.hbm_to_vmem [thread:$0]  %s276, 192, %s278, %s266, 32, 32, 2
        $region36: #{tpu_custom_call.1} parent=31 // pred_fallthru
          _
      $region32: #{tpu_custom_call.1} parent=5 // pred_fallthru
        _
      %p284 = scmp.le.s32.totalorder 1, %s25
      %p285 = scmp.lt.s32.totalorder %s25, 3
      %p286 = pnand %p284, %p285
      %p287 = pneg %p286
      // Predicated region
      $region37: #{tpu_custom_call.1} parent=5 // pred_check
        _
      $region38: #{tpu_custom_call.1} parent=5 // pred_check_branch
        %289 = sbr.rel (%p286) target = $region40
      $region39: #{tpu_custom_call.1} parent=5 // pred_region
        %s290 = ssub.s32 %s25, 1
        %s291 = sand.u32 %s52, 1
        %s292 = scalar_lea.sflag [#allocation3], %s291
        %s293 = sand.u32 %s52, 1
        %s294 = smul.addr %s293, 12
        %s295 = scalar_lea.vmem [#allocation2], %s294
        // Predicated region
        $region41: #{tpu_custom_call.1} parent=39 // pred_check
          %p296 = pneg %p65
        $region42: #{tpu_custom_call.1} parent=39 // pred_check_branch
          %298 = sbr.rel (%p296) target = $region44
        $region43: #{tpu_custom_call.1} parent=39 // pred_region
          %299 = dma.done %s292, 192
        $region44: #{tpu_custom_call.1} parent=39 // pred_fallthru
          _
        // Predicated region
        $region45: #{tpu_custom_call.1} parent=39 // pred_check
          %p300 = pneg %p86
        $region46: #{tpu_custom_call.1} parent=39 // pred_check_branch
          %302 = sbr.rel (%p300) target = $region48
        $region47: #{tpu_custom_call.1} parent=39 // pred_region
          %303 = dma.done [#allocation6], 16
        $region48: #{tpu_custom_call.1} parent=39 // pred_fallthru
          _
        // Predicated region
        $region49: #{tpu_custom_call.1} parent=39 // pred_check
          %p304 = pneg %p107
        $region50: #{tpu_custom_call.1} parent=39 // pred_check_branch
          %306 = sbr.rel (%p304) target = $region52
        $region51: #{tpu_custom_call.1} parent=39 // pred_region
          %307 = dma.done [#allocation5], 128
        $region52: #{tpu_custom_call.1} parent=39 // pred_fallthru
          _
        // Predicated region
        $region53: #{tpu_custom_call.1} parent=39 // pred_check
          %p308 = pneg %p128
        $region54: #{tpu_custom_call.1} parent=39 // pred_check_branch
          %310 = sbr.rel (%p308) target = $region56
        $region55: #{tpu_custom_call.1} parent=39 // pred_region
          %311 = dma.done [#allocation10], 128
        $region56: #{tpu_custom_call.1} parent=39 // pred_fallthru
          _
        // Predicated region
        $region57: #{tpu_custom_call.1} parent=39 // pred_check
          %p312 = pneg %p149
        $region58: #{tpu_custom_call.1} parent=39 // pred_check_branch
          %314 = sbr.rel (%p312) target = $region60
        $region59: #{tpu_custom_call.1} parent=39 // pred_region
          %315 = dma.done [#allocation10], 128
        $region60: #{tpu_custom_call.1} parent=39 // pred_fallthru
          _
        %316 = sfence
        %s317 = sand.u32 %s52, 1
        %s318 = scalar_lea.sflag [#allocation3], %s317
        %s319 = sand.u32 %s52, 1
        %s320 = smul.addr %s319, 12
        %s321 = scalar_lea.vmem [#allocation2], %s320
        %p322 = pneg %p65
        %p323 = pneg %p62
        %p324 = pneg %p86
        %p325 = pneg %p83
        %p326 = pneg %p107
        %p327 = pneg %p104
        %p328 = pneg %p128
        %p329 = pneg %p125
        %p330 = pneg %p149
        %p331 = pneg %p146
        %p332 = pneg %p177
        %p333 = pneg %p174
        %s334 = sand.u32 %s164, 1
        %s335 = scalar_lea.sflag [#allocation4], %s334
        %s336 = sand.u32 %s164, 1
        %s337 = smul.addr %s336, 12
        %s338 = scalar_lea.vmem [#allocation12], %s337
        %p339 = pneg %p205
        %p340 = pneg %p202
        %s341 = sand.u32 %s192, 1
        %s342 = scalar_lea.sflag [#allocation14], %s341
        %s343 = sand.u32 %s192, 1
        %s344 = smul.addr %s343, 2
        %s345 = scalar_lea.vmem [#allocation13], %s344
        %v346 = vld [vmem:[%s295] sm:$0x3]
        %s347 = scalar_lea.vmem %s295, 2 [#allocation2]
        %v348 = vld [vmem:[%s347] sm:$0x3]
        %s349 = scalar_lea.vmem %s295, 4 [#allocation2]
        %v350 = vld [vmem:[%s349] sm:$0x3]
        %s351 = scalar_lea.vmem %s295, 6 [#allocation2]
        %v352 = vld [vmem:[%s351] sm:$0x3]
        %s353 = scalar_lea.vmem %s295, 8 [#allocation2]
        %v354 = vld [vmem:[%s353] sm:$0x3]
        %s355 = scalar_lea.vmem %s295, 10 [#allocation2]
        %v356 = vld [vmem:[%s355] sm:$0x3]
        %v357 = vmul.f32 %v346, %v346
        %v358 = vmul.f32 %v348, %v348
        %v359 = vadd.f32 %v357, %v358
        %v360 = vmul.f32 %v350, %v350
        %v361 = vadd.f32 %v359, %v360
        %v362 = vmul.f32 %v352, %v352
        %v363 = vadd.f32 %v361, %v362
        %v364 = vmul.f32 %v354, %v354
        %v365 = vadd.f32 %v363, %v364
        %v366 = vmul.f32 %v356, %v356
        %v367 = vadd.f32 %v365, %v366
        %v368 = vmax.f32 %v367, 1e-24
        %v369 = vrsqrt.pop %v368
        %v370 = vmul.f32 %v346, %v369
        %s371 = sld [smem:[#allocation7]]
        %v372 = vstv %s371
        %v373 = vmul.f32 %v370, %v372
        %s374 = sld [smem:[#allocation9]]
        %v375 = vstv %s374
        %s376 = sld [smem:[#allocation11]]
        %v377 = vstv %s376
        %s378 = sld [smem:[#allocation8]]
        %v379 = vstv %s378
        %vm380 = vcmp.gt.f32.partialorder %v373, %v379
        %s381 = sld [smem:[#allocation9 + $0x1]]
        %v382 = vstv %s381
        %v383 = vsel %vm380, %v382, %v375
        %s384 = sld [smem:[#allocation11 + $0x1]]
        %v385 = vstv %s384
        %v386 = vsel %vm380, %v385, %v377
        %s387 = sld [smem:[#allocation8 + $0x1]]
        %v388 = vstv %s387
        %vm389 = vcmp.gt.f32.partialorder %v373, %v388
        %s390 = sld [smem:[#allocation9 + $0x2]]
        %v391 = vstv %s390
        %v392 = vsel %vm389, %v391, %v383
        %s393 = sld [smem:[#allocation11 + $0x2]]
        %v394 = vstv %s393
        %v395 = vsel %vm389, %v394, %v386
        %s396 = sld [smem:[#allocation8 + $0x2]]
        %v397 = vstv %s396
        %vm398 = vcmp.gt.f32.partialorder %v373, %v397
        %s399 = sld [smem:[#allocation9 + $0x3]]
        %v400 = vstv %s399
        %v401 = vsel %vm398, %v400, %v392
        %s402 = sld [smem:[#allocation11 + $0x3]]
        %v403 = vstv %s402
        %v404 = vsel %vm398, %v403, %v395
        %s405 = sld [smem:[#allocation8 + $0x3]]
        %v406 = vstv %s405
        %vm407 = vcmp.gt.f32.partialorder %v373, %v406
        %s408 = sld [smem:[#allocation9 + $0x4]]
        %v409 = vstv %s408
        %v410 = vsel %vm407, %v409, %v401
        %s411 = sld [smem:[#allocation11 + $0x4]]
        %v412 = vstv %s411
        %v413 = vsel %vm407, %v412, %v404
        %s414 = sld [smem:[#allocation8 + $0x4]]
        %v415 = vstv %s414
        %vm416 = vcmp.gt.f32.partialorder %v373, %v415
        %s417 = sld [smem:[#allocation9 + $0x5]]
        %v418 = vstv %s417
        %v419 = vsel %vm416, %v418, %v410
        %s420 = sld [smem:[#allocation11 + $0x5]]
        %v421 = vstv %s420
        %v422 = vsel %vm416, %v421, %v413
        %s423 = sld [smem:[#allocation8 + $0x5]]
        %v424 = vstv %s423
        %vm425 = vcmp.gt.f32.partialorder %v373, %v424
        %s426 = sld [smem:[#allocation9 + $0x6]]
        %v427 = vstv %s426
        %v428 = vsel %vm425, %v427, %v419
        %s429 = sld [smem:[#allocation11 + $0x6]]
        %v430 = vstv %s429
        %v431 = vsel %vm425, %v430, %v422
        %s432 = sld [smem:[#allocation8 + $0x6]]
        %v433 = vstv %s432
        %vm434 = vcmp.gt.f32.partialorder %v373, %v433
        %s435 = sld [smem:[#allocation9 + $0x7]]
        %v436 = vstv %s435
        %v437 = vsel %vm434, %v436, %v428
        %s438 = sld [smem:[#allocation11 + $0x7]]
        %v439 = vstv %s438
        %v440 = vsel %vm434, %v439, %v431
        %441 = vst [vmem:[%s338] sm:$0x3] %v437
        %v442 = vmul.f32 %v348, %v369
        %s443 = sld [smem:[#allocation7 + $0x1]]
        %v444 = vstv %s443
        %v445 = vmul.f32 %v442, %v444
        %s446 = sld [smem:[#allocation9 + $0x80]]
        %v447 = vstv %s446
        %s448 = sld [smem:[#allocation11 + $0x80]]
        %v449 = vstv %s448
        %s450 = sld [smem:[#allocation8 + $0x80]]
        %v451 = vstv %s450
        %vm452 = vcmp.gt.f32.partialorder %v445, %v451
        %s453 = sld [smem:[#allocation9 + $0x81]]
        %v454 = vstv %s453
        %v455 = vsel %vm452, %v454, %v447
        %s456 = sld [smem:[#allocation11 + $0x81]]
        %v457 = vstv %s456
        %v458 = vsel %vm452, %v457, %v449
        %s459 = sld [smem:[#allocation8 + $0x81]]
        %v460 = vstv %s459
        %vm461 = vcmp.gt.f32.partialorder %v445, %v460
        %s462 = sld [smem:[#allocation9 + $0x82]]
        %v463 = vstv %s462
        %v464 = vsel %vm461, %v463, %v455
        %s465 = sld [smem:[#allocation11 + $0x82]]
        %v466 = vstv %s465
        %v467 = vsel %vm461, %v466, %v458
        %s468 = sld [smem:[#allocation8 + $0x82]]
        %v469 = vstv %s468
        %vm470 = vcmp.gt.f32.partialorder %v445, %v469
        %s471 = sld [smem:[#allocation9 + $0x83]]
        %v472 = vstv %s471
        %v473 = vsel %vm470, %v472, %v464
        %s474 = sld [smem:[#allocation11 + $0x83]]
        %v475 = vstv %s474
        %v476 = vsel %vm470, %v475, %v467
        %s477 = sld [smem:[#allocation8 + $0x83]]
        %v478 = vstv %s477
        %vm479 = vcmp.gt.f32.partialorder %v445, %v478
        %s480 = sld [smem:[#allocation9 + $0x84]]
        %v481 = vstv %s480
        %v482 = vsel %vm479, %v481, %v473
        %s483 = sld [smem:[#allocation11 + $0x84]]
        %v484 = vstv %s483
        %v485 = vsel %vm479, %v484, %v476
        %s486 = sld [smem:[#allocation8 + $0x84]]
        %v487 = vstv %s486
        %vm488 = vcmp.gt.f32.partialorder %v445, %v487
        %s489 = sld [smem:[#allocation9 + $0x85]]
        %v490 = vstv %s489
        %v491 = vsel %vm488, %v490, %v482
        %s492 = sld [smem:[#allocation11 + $0x85]]
        %v493 = vstv %s492
        %v494 = vsel %vm488, %v493, %v485
        %s495 = sld [smem:[#allocation8 + $0x85]]
        %v496 = vstv %s495
        %vm497 = vcmp.gt.f32.partialorder %v445, %v496
        %s498 = sld [smem:[#allocation9 + $0x86]]
        %v499 = vstv %s498
        %v500 = vsel %vm497, %v499, %v491
        %s501 = sld [smem:[#allocation11 + $0x86]]
        %v502 = vstv %s501
        %v503 = vsel %vm497, %v502, %v494
        %s504 = sld [smem:[#allocation8 + $0x86]]
        %v505 = vstv %s504
        %vm506 = vcmp.gt.f32.partialorder %v445, %v505
        %s507 = sld [smem:[#allocation9 + $0x87]]
        %v508 = vstv %s507
        %v509 = vsel %vm506, %v508, %v500
        %s510 = sld [smem:[#allocation11 + $0x87]]
        %v511 = vstv %s510
        %v512 = vsel %vm506, %v511, %v503
        %s513 = scalar_lea.vmem %s338, 2 [#allocation12]
        %514 = vst [vmem:[%s513] sm:$0x3] %v509
        %v515 = vadd.s32 %v440, %v512
        %v516 = vmul.f32 %v350, %v369
        %s517 = sld [smem:[#allocation7 + $0x2]]
        %v518 = vstv %s517
        %v519 = vmul.f32 %v516, %v518
        %s520 = sld [smem:[#allocation9 + $0x100]]
        %v521 = vstv %s520
        %s522 = sld [smem:[#allocation11 + $0x100]]
        %v523 = vstv %s522
        %s524 = sld [smem:[#allocation8 + $0x100]]
        %v525 = vstv %s524
        %vm526 = vcmp.gt.f32.partialorder %v519, %v525
        %s527 = sld [smem:[#allocation9 + $0x101]]
        %v528 = vstv %s527
        %v529 = vsel %vm526, %v528, %v521
        %s530 = sld [smem:[#allocation11 + $0x101]]
        %v531 = vstv %s530
        %v532 = vsel %vm526, %v531, %v523
        %s533 = sld [smem:[#allocation8 + $0x101]]
        %v534 = vstv %s533
        %vm535 = vcmp.gt.f32.partialorder %v519, %v534
        %s536 = sld [smem:[#allocation9 + $0x102]]
        %v537 = vstv %s536
        %v538 = vsel %vm535, %v537, %v529
        %s539 = sld [smem:[#allocation11 + $0x102]]
        %v540 = vstv %s539
        %v541 = vsel %vm535, %v540, %v532
        %s542 = sld [smem:[#allocation8 + $0x102]]
        %v543 = vstv %s542
        %vm544 = vcmp.gt.f32.partialorder %v519, %v543
        %s545 = sld [smem:[#allocation9 + $0x103]]
        %v546 = vstv %s545
        %v547 = vsel %vm544, %v546, %v538
        %s548 = sld [smem:[#allocation11 + $0x103]]
        %v549 = vstv %s548
        %v550 = vsel %vm544, %v549, %v541
        %s551 = sld [smem:[#allocation8 + $0x103]]
        %v552 = vstv %s551
        %vm553 = vcmp.gt.f32.partialorder %v519, %v552
        %s554 = sld [smem:[#allocation9 + $0x104]]
        %v555 = vstv %s554
        %v556 = vsel %vm553, %v555, %v547
        %s557 = sld [smem:[#allocation11 + $0x104]]
        %v558 = vstv %s557
        %v559 = vsel %vm553, %v558, %v550
        %s560 = sld [smem:[#allocation8 + $0x104]]
        %v561 = vstv %s560
        %vm562 = vcmp.gt.f32.partialorder %v519, %v561
        %s563 = sld [smem:[#allocation9 + $0x105]]
        %v564 = vstv %s563
        %v565 = vsel %vm562, %v564, %v556
        %s566 = sld [smem:[#allocation11 + $0x105]]
        %v567 = vstv %s566
        %v568 = vsel %vm562, %v567, %v559
        %s569 = sld [smem:[#allocation8 + $0x105]]
        %v570 = vstv %s569
        %vm571 = vcmp.gt.f32.partialorder %v519, %v570
        %s572 = sld [smem:[#allocation9 + $0x106]]
        %v573 = vstv %s572
        %v574 = vsel %vm571, %v573, %v565
        %s575 = sld [smem:[#allocation11 + $0x106]]
        %v576 = vstv %s575
        %v577 = vsel %vm571, %v576, %v568
        %s578 = sld [smem:[#allocation8 + $0x106]]
        %v579 = vstv %s578
        %vm580 = vcmp.gt.f32.partialorder %v519, %v579
        %s581 = sld [smem:[#allocation9 + $0x107]]
        %v582 = vstv %s581
        %v583 = vsel %vm580, %v582, %v574
        %s584 = sld [smem:[#allocation11 + $0x107]]
        %v585 = vstv %s584
        %v586 = vsel %vm580, %v585, %v577
        %s587 = scalar_lea.vmem %s338, 4 [#allocation12]
        %588 = vst [vmem:[%s587] sm:$0x3] %v583
        %v589 = vadd.s32 %v515, %v586
        %v590 = vmul.f32 %v352, %v369
        %s591 = sld [smem:[#allocation7 + $0x3]]
        %v592 = vstv %s591
        %v593 = vmul.f32 %v590, %v592
        %s594 = sld [smem:[#allocation9 + $0x180]]
        %v595 = vstv %s594
        %s596 = sld [smem:[#allocation11 + $0x180]]
        %v597 = vstv %s596
        %s598 = sld [smem:[#allocation8 + $0x180]]
        %v599 = vstv %s598
        %vm600 = vcmp.gt.f32.partialorder %v593, %v599
        %s601 = sld [smem:[#allocation9 + $0x181]]
        %v602 = vstv %s601
        %v603 = vsel %vm600, %v602, %v595
        %s604 = sld [smem:[#allocation11 + $0x181]]
        %v605 = vstv %s604
        %v606 = vsel %vm600, %v605, %v597
        %s607 = sld [smem:[#allocation8 + $0x181]]
        %v608 = vstv %s607
        %vm609 = vcmp.gt.f32.partialorder %v593, %v608
        %s610 = sld [smem:[#allocation9 + $0x182]]
        %v611 = vstv %s610
        %v612 = vsel %vm609, %v611, %v603
        %s613 = sld [smem:[#allocation11 + $0x182]]
        %v614 = vstv %s613
        %v615 = vsel %vm609, %v614, %v606
        %s616 = sld [smem:[#allocation8 + $0x182]]
        %v617 = vstv %s616
        %vm618 = vcmp.gt.f32.partialorder %v593, %v617
        %s619 = sld [smem:[#allocation9 + $0x183]]
        %v620 = vstv %s619
        %v621 = vsel %vm618, %v620, %v612
        %s622 = sld [smem:[#allocation11 + $0x183]]
        %v623 = vstv %s622
        %v624 = vsel %vm618, %v623, %v615
        %s625 = sld [smem:[#allocation8 + $0x183]]
        %v626 = vstv %s625
        %vm627 = vcmp.gt.f32.partialorder %v593, %v626
        %s628 = sld [smem:[#allocation9 + $0x184]]
        %v629 = vstv %s628
        %v630 = vsel %vm627, %v629, %v621
        %s631 = sld [smem:[#allocation11 + $0x184]]
        %v632 = vstv %s631
        %v633 = vsel %vm627, %v632, %v624
        %s634 = scalar_lea.vmem %s338, 6 [#allocation12]
        %635 = vst [vmem:[%s634] sm:$0x3] %v630
        %v636 = vadd.s32 %v589, %v633
        %v637 = vmul.f32 %v354, %v369
        %s638 = sld [smem:[#allocation7 + $0x4]]
        %v639 = vstv %s638
        %v640 = vmul.f32 %v637, %v639
        %s641 = sld [smem:[#allocation9 + $0x200]]
        %v642 = vstv %s641
        %s643 = sld [smem:[#allocation11 + $0x200]]
        %v644 = vstv %s643
        %s645 = sld [smem:[#allocation8 + $0x200]]
        %v646 = vstv %s645
        %vm647 = vcmp.gt.f32.partialorder %v640, %v646
        %s648 = sld [smem:[#allocation9 + $0x201]]
        %v649 = vstv %s648
        %v650 = vsel %vm647, %v649, %v642
        %s651 = sld [smem:[#allocation11 + $0x201]]
        %v652 = vstv %s651
        %v653 = vsel %vm647, %v652, %v644
        %s654 = sld [smem:[#allocation8 + $0x201]]
        %v655 = vstv %s654
        %vm656 = vcmp.gt.f32.partialorder %v640, %v655
        %s657 = sld [smem:[#allocation9 + $0x202]]
        %v658 = vstv %s657
        %v659 = vsel %vm656, %v658, %v650
        %s660 = sld [smem:[#allocation11 + $0x202]]
        %v661 = vstv %s660
        %v662 = vsel %vm656, %v661, %v653
        %s663 = sld [smem:[#allocation8 + $0x202]]
        %v664 = vstv %s663
        %vm665 = vcmp.gt.f32.partialorder %v640, %v664
        %s666 = sld [smem:[#allocation9 + $0x203]]
        %v667 = vstv %s666
        %v668 = vsel %vm665, %v667, %v659
        %s669 = sld [smem:[#allocation11 + $0x203]]
        %v670 = vstv %s669
        %v671 = vsel %vm665, %v670, %v662
        %s672 = sld [smem:[#allocation8 + $0x203]]
        %v673 = vstv %s672
        %vm674 = vcmp.gt.f32.partialorder %v640, %v673
        %s675 = sld [smem:[#allocation9 + $0x204]]
        %v676 = vstv %s675
        %v677 = vsel %vm674, %v676, %v668
        %s678 = sld [smem:[#allocation11 + $0x204]]
        %v679 = vstv %s678
        %v680 = vsel %vm674, %v679, %v671
        %s681 = scalar_lea.vmem %s338, 8 [#allocation12]
        %682 = vst [vmem:[%s681] sm:$0x3] %v677
        %v683 = vadd.s32 %v636, %v680
        %v684 = vmul.f32 %v356, %v369
        %s685 = sld [smem:[#allocation7 + $0x5]]
        %v686 = vstv %s685
        %v687 = vmul.f32 %v684, %v686
        %s688 = sld [smem:[#allocation9 + $0x280]]
        %v689 = vstv %s688
        %s690 = sld [smem:[#allocation11 + $0x280]]
        %v691 = vstv %s690
        %s692 = sld [smem:[#allocation8 + $0x280]]
        %v693 = vstv %s692
        %vm694 = vcmp.gt.f32.partialorder %v687, %v693
        %s695 = sld [smem:[#allocation9 + $0x281]]
        %v696 = vstv %s695
        %v697 = vsel %vm694, %v696, %v689
        %s698 = sld [smem:[#allocation11 + $0x281]]
        %v699 = vstv %s698
        %v700 = vsel %vm694, %v699, %v691
        %s701 = sld [smem:[#allocation8 + $0x281]]
        %v702 = vstv %s701
        %vm703 = vcmp.gt.f32.partialorder %v687, %v702
        %s704 = sld [smem:[#allocation9 + $0x282]]
        %v705 = vstv %s704
        %v706 = vsel %vm703, %v705, %v697
        %s707 = sld [smem:[#allocation11 + $0x282]]
        %v708 = vstv %s707
        %v709 = vsel %vm703, %v708, %v700
        %s710 = sld [smem:[#allocation8 + $0x282]]
        %v711 = vstv %s710
        %vm712 = vcmp.gt.f32.partialorder %v687, %v711
        %s713 = sld [smem:[#allocation9 + $0x283]]
        %v714 = vstv %s713
        %v715 = vsel %vm712, %v714, %v706
        %s716 = sld [smem:[#allocation11 + $0x283]]
        %v717 = vstv %s716
        %v718 = vsel %vm712, %v717, %v709
        %s719 = sld [smem:[#allocation8 + $0x283]]
        %v720 = vstv %s719
        %vm721 = vcmp.gt.f32.partialorder %v687, %v720
        %s722 = sld [smem:[#allocation9 + $0x284]]
        %v723 = vstv %s722
        %v724 = vsel %vm721, %v723, %v715
        %s725 = sld [smem:[#allocation11 + $0x284]]
        %v726 = vstv %s725
        %v727 = vsel %vm721, %v726, %v718
        %s728 = scalar_lea.vmem %s338, 10 [#allocation12]
        %729 = vst [vmem:[%s728] sm:$0x3] %v724
        %v730 = vadd.s32 %v683, %v727
        %731 = vst [vmem:[%s345] sm:$0x3] %v730
        %s732 = sand.u32 %s164, 1
        %s733 = scalar_lea.sflag [#allocation4], %s732
        %s734 = sand.u32 %s164, 1
        %s735 = smul.addr %s734, 12
        %s736 = scalar_lea.vmem [#allocation12], %s735
        %s737 = sand.u32 %s192, 1
        %s738 = scalar_lea.sflag [#allocation14], %s737
        %s739 = sand.u32 %s192, 1
        %s740 = smul.addr %s739, 2
        %s741 = scalar_lea.vmem [#allocation13], %s740
        // Predicated region
        $region61: #{tpu_custom_call.1} parent=39 // pred_check
          %p742 = pneg %p174
        $region62: #{tpu_custom_call.1} parent=39 // pred_check_branch
          %744 = sbr.rel (%p742) target = $region64
        $region63: #{tpu_custom_call.1} parent=39 // pred_region
          %s746 = ssub.s32 192, 192
          %747 = vsyncadd %s733, %s746
          %s748 = smul.addr %s34, 6
          %s749 = sadd.s32 %s35, %s748
          %s750 = smul.addr %s749, 32
          %s751 = scalar_lea.hbm %s5, %s750
          %s752 = sshll.u32 %s736, 4
          %s753 = int_to_ptr.vmem [resolvable:$true] %s752
          %758 = dma.vmem_to_hbm [thread:$0]  %s753, 192, %s751, %s733, 32, 32, 2
        $region64: #{tpu_custom_call.1} parent=39 // pred_fallthru
          _
        // Predicated region
        $region65: #{tpu_custom_call.1} parent=39 // pred_check
          %p759 = pneg %p202
        $region66: #{tpu_custom_call.1} parent=39 // pred_check_branch
          %761 = sbr.rel (%p759) target = $region68
        $region67: #{tpu_custom_call.1} parent=39 // pred_region
          %s763 = ssub.s32 32, 32
          %764 = vsyncadd %s738, %s763
          %s765 = sadd.s32 %s35, %s34
          %s766 = smul.addr %s765, 32
          %s767 = scalar_lea.hbm %s6, %s766
          %s769 = sshll.u32 %s741, 4
          %s770 = int_to_ptr.vmem [resolvable:$true] %s769
          %772 = dma.vmem_to_hbm [thread:$0]  %s770, 32, %s767, %s738
        $region68: #{tpu_custom_call.1} parent=39 // pred_fallthru
          _
      $region40: #{tpu_custom_call.1} parent=5 // pred_fallthru
        _
      %p773 = scmp.le.s32.totalorder 2, %s25
      // Predicated region
      $region69: #{tpu_custom_call.1} parent=5 // pred_check
        %p774 = pneg %p773
      $region70: #{tpu_custom_call.1} parent=5 // pred_check_branch
        %776 = sbr.rel (%p774) target = $region72
      $region71: #{tpu_custom_call.1} parent=5 // pred_region
        %s777 = ssub.s32 %s25, 2
        // Predicated region
        $region73: #{tpu_custom_call.1} parent=71 // pred_check
          %p778 = pneg %p180
        $region74: #{tpu_custom_call.1} parent=71 // pred_check_branch
          %780 = sbr.rel (%p778) target = $region76
        $region75: #{tpu_custom_call.1} parent=71 // pred_region
          %s781 = sand.u32 %s165, 1
          %s782 = scalar_lea.sflag [#allocation4], %s781
          %s783 = sand.u32 %s165, 1
          %s784 = smul.addr %s783, 12
          %s785 = scalar_lea.vmem [#allocation12], %s784
          %786 = dma.done %s782, 192
        $region76: #{tpu_custom_call.1} parent=71 // pred_fallthru
          _
        // Predicated region
        $region77: #{tpu_custom_call.1} parent=71 // pred_check
          %p787 = pneg %p208
        $region78: #{tpu_custom_call.1} parent=71 // pred_check_branch
          %789 = sbr.rel (%p787) target = $region80
        $region79: #{tpu_custom_call.1} parent=71 // pred_region
          %s790 = sand.u32 %s193, 1
          %s791 = scalar_lea.sflag [#allocation14], %s790
          %s792 = sand.u32 %s193, 1
          %s793 = smul.addr %s792, 2
          %s794 = scalar_lea.vmem [#allocation13], %s793
          %795 = dma.done %s791, 32
        $region80: #{tpu_custom_call.1} parent=71 // pred_fallthru
          _
      $region72: #{tpu_custom_call.1} parent=5 // pred_fallthru
        _
    $region6: #{tpu_custom_call.1} parent=1 // loop_footer
      %s29 = sadd.s32 1, %s25
    $region7: #{tpu_custom_call.1} parent=1 // loop_footer_branch
      %24 = sbr.rel target = $region3
    $region8: #{tpu_custom_call.1} parent=1 // loop_exit
      _
    %796 = vsyncpa [#allocation3], 1
    %s797 = scalar_lea.sflag [#allocation3], 1
    %798 = vsyncpa %s797, 1
    %799 = vsyncpa [#allocation4], 1
    %s800 = scalar_lea.sflag [#allocation4], 1
    %801 = vsyncpa %s800, 1
    %802 = vsyncpa [#allocation14], 1
    %s803 = scalar_lea.sflag [#allocation14], 1
    %804 = vsyncpa %s803, 1
    %805 = vsyncpa [#allocation5], 1
    %s806 = scalar_lea.sflag [#allocation5], 1
    %807 = vsyncpa %s806, 1
    %808 = vsyncpa [#allocation10], 1
    %809 = vsyncpa [#allocation6], 1
    %s810 = scalar_lea.sflag [#allocation6], 1
    %811 = vsyncpa %s810, 1

</llo_original>
